<compile_context>
chip_gen: v5e
topology: v5e:2x2
jax: 0.10.0
libtpu: 0.0.40
codegen_flags: <defaults>
</compile_context>

<pallas_src>
import numpy as np
import jax
import jax.numpy as jnp
from jax.experimental import pallas as pl
from jax.experimental.pallas import tpu as pltpu

# ----------------------------- config (mirrors args) -----------------------------
SAMPLE_RATE = 64          # args.sample_rate (input sequence length)
PATCH_SIZE  = 8           # args.patch_size
EMB_DIM     = 32          # args.emb_dim
DEPTH       = 2           # args.depth
MLP_RATIO   = 3.0
NUM_CLASSES = 5
STRIDE      = PATCH_SIZE // 2
NUM_PATCHES = (SAMPLE_RATE - PATCH_SIZE) // STRIDE + 1     # 15
HIDDEN      = int(EMB_DIM * MLP_RATIO)                     # 96
NFREQ       = NUM_PATCHES // 2 + 1                         # 8
LN_EPS      = 1e-5
MEDIAN_RANK = float((NFREQ - 1) // 2)                      # torch.median = lower median

N_PAD   = ((NUM_PATCHES + 7) // 8) * 8                     # 16 token rows (sublane aligned)
DFT_W   = max(N_PAD, 2 * NFREQ)                            # 16 shared column count of the DFT pack
X1_OFF  = 128                                              # lane-aligned offset of the conv1 block
ICB_OUT = X1_OFF + HIDDEN                                  # 224: [x2 (0:96) | pad | x1 (128:224)]
assert HIDDEN <= X1_OFF

# ----------------------------- in-kernel math helpers -----------------------------
_SQRT1_2 = 0.7071067811865476

def _erf_approx(z):
    # TODO(synk): exact erf-GELU approximated with Abramowitz & Stegun 7.1.26 (|err| < 1.5e-7),
    # since lax.erf may not lower inside Mosaic; kept in f32 (compounds over DEPTH layers).
    s = jnp.where(z >= 0.0, 1.0, -1.0)
    a = jnp.abs(z)
    t = 1.0 / (1.0 + 0.3275911 * a)
    poly = t * (0.254829592 + t * (-0.284496736 + t * (1.421413741
             + t * (-1.453152027 + t * 1.061405429))))
    return s * (1.0 - poly * jnp.exp(-a * a))

def _gelu(x):           # nn.GELU() (exact, erf-based)
    return 0.5 * x * (1.0 + _erf_approx(x * _SQRT1_2))

def _layernorm(x, g, b):
    mu = jnp.mean(x, axis=-1, keepdims=True)
    var = jnp.mean((x - mu) ** 2, axis=-1, keepdims=True)
    return (x - mu) * jax.lax.rsqrt(var + LN_EPS) * g + b

# ----------------------------- the per-batch kernel -----------------------------
def _tslanet_kernel(patches_ref,                 # (1, N_PAD, P)        one batch element
                    dft_ref,                     # (2F + 3*N_PAD, DFT_W) [rfft; irfft; irfft_prev; irfft_next]
                    vecc_ref,                    # (2 + 9*DEPTH, C)     packed (1,C) vectors
                    icbb_ref,                    # (DEPTH, ICB_OUT)     packed ICB biases
                    wicb_ref,                    # (DEPTH, 3C, ICB_OUT) fused conv1/conv2 weights
                    wsc_ref,                     # (P + H*DEPTH + C, C) [pe_w; w3*; head_w(padded)]
                    thrs_ref,                    # (DEPTH,) in SMEM     per-layer thresholds
                    o_ref):                      # (1, 1, NUM_CLASSES)
    f32 = jnp.float32
    F, C, H, NP = NFREQ, EMB_DIM, HIDDEN, N_PAD

    x    = patches_ref[0]                                    # (NP, P)
    dfta = dft_ref[...]
    vecc = vecc_ref[...]
    icbb = icbb_ref[...]
    wsc  = wsc_ref[...]

    dftf = dfta[0:2 * F, 0:NP]                                # (2F, NP)  rows = [Re; Im] of ortho rfft
    binv = dfta[2 * F:2 * F + 3 * NP, 0:2 * F]                # (3NP, 2F) [irfft; prev-shift; next-shift]

    pe_w   = wsc[0:PATCH_SIZE]                                # (P, C)
    head_w = wsc[PATCH_SIZE + H * DEPTH:PATCH_SIZE + H * DEPTH + C]   # (C, C), cols >= NC are zero
    pe_b   = vecc[0:1]
    head_b = vecc[1:2]                                        # padded to C lanes

    # iota-derived helpers (hoisted; replaces the old O((B*F)^2)/O(B*N) constants + their DMAs)
    tok     = jax.lax.broadcasted_iota(jnp.int32, (NP, 1), 0)
    valid   = (tok < NUM_PATCHES).astype(f32)                 # real (unpadded) token rows
    m_prev0 = (tok > 0).astype(f32)                           # left zero-pad of the k=3 conv
    m_nextL = (tok != NUM_PATCHES - 1).astype(f32)            # right zero-pad of the k=3 conv
    fidx_r = jax.lax.broadcasted_iota(jnp.int32, (F, F), 0)
    fidx_c = jax.lax.broadcasted_iota(jnp.int32, (F, F), 1)
    eyeF = (fidx_r == fidx_c).astype(f32)
    tiuF = (fidx_r < fidx_c).astype(f32)

    # PatchEmbed: Conv1d(1, C, k=P, stride=P//2) == patches @ W + b
    h = jnp.dot(x, pe_w, preferred_element_type=f32) + pe_b   # (NP, C)

    for l in range(DEPTH):                                    # static unroll over layers
        base = 2 + 9 * l
        g1, b1 = vecc[base + 0:base + 1], vecc[base + 1:base + 2]
        g2, b2 = vecc[base + 2:base + 3], vecc[base + 3:base + 4]
        wre, wim   = vecc[base + 4:base + 5], vecc[base + 5:base + 6]
        whre, whim = vecc[base + 6:base + 7], vecc[base + 7:base + 8]
        b3c = vecc[base + 8:base + 9]
        thr = thrs_ref[l]                                     # scalar read from SMEM
        w3  = wsc[PATCH_SIZE + H * l:PATCH_SIZE + H * (l + 1)]        # (H, C)
        wcb = wicb_ref[l]                                     # (3C, ICB_OUT)

        # ---------------- Adaptive Spectral Block ----------------
        xn   = _layernorm(h, g1, b1)                                     # (NP, C)
        frfi = jnp.dot(dftf, xn, preferred_element_type=f32)             # (2F, C) = [Re; Im] (one GEMM)
        fr, fi = frfi[0:F], frfi[F:2 * F]

        # per-frequency energy + per-batch lower median (torch.median) via rank-by-count
        energy = fr * fr + fi * fi
        e_col  = jnp.sum(energy, axis=1, keepdims=True)                  # (F, 1)
        e_row  = jnp.sum(eyeF * e_col, axis=0, keepdims=True)            # (1, F) bit-exact copy (no MXU)
        less   = (e_col < e_row).astype(f32)                             # [i,j] = e[i] < e[j]
        equal  = (e_col == e_row).astype(f32)
        rank   = jnp.sum(less + tiuF * equal, axis=0, keepdims=True)     # stable ascending rank
        sel    = (rank == MEDIAN_RANK).astype(f32)                       # exactly one hot
        med    = jnp.sum(e_row * sel, axis=1, keepdims=True)             # (1, 1)
        mask   = (e_col / (med + 1e-6) > thr).astype(f32)                # (F, 1) hard 0/1 (STE fwd value)

        # complex weighting: x_fft * w + (x_fft * mask) * w_high
        mre, mim = fr * mask, fi * mask
        t_re = fr * wre - fi * wim + mre * whre - mim * whim
        t_im = fr * wim + fi * wre + mre * whim + mim * whre
        t = jnp.concatenate([t_re, t_im], axis=0)                        # (2F, C) (vreg-aligned concat)

        # irfft AND both token shifts in ONE matmul (binv rows are a host-side row permutation)
        asb3 = jnp.dot(binv, t, preferred_element_type=f32)              # (3NP, C)

        # ---------------- norm2 + ICB ----------------
        y3 = _layernorm(asb3, g2, b2)                                    # rowwise LN of all 3 copies
        y      = y3[0:NP]
        y_prev = y3[NP:2 * NP] * m_prev0
        y_next = y3[2 * NP:3 * NP] * m_nextL

        # conv1 + 3-tap conv2 fused into one 224-wide output (x2 lanes 0:96, x1 lanes 128:224)
        z = (jnp.dot(y_prev, wcb[0:C], preferred_element_type=f32)
             + jnp.dot(y, wcb[C:2 * C], preferred_element_type=f32)
             + jnp.dot(y_next, wcb[2 * C:3 * C], preferred_element_type=f32)
             + icbb[l:l + 1, :])
        x2 = z[:, 0:H]
        x1 = z[:, X1_OFF:X1_OFF + H]
        comb = x1 * _gelu(x2) + x2 * _gelu(x1)
        h = h + jnp.dot(comb, w3, preferred_element_type=f32) + b3c      # conv3 (1x1) + residual

    # mean over real tokens (masked sublane reduce, no matmul) + classification head
    m = jnp.sum(h * valid, axis=0, keepdims=True) * (1.0 / NUM_PATCHES)  # (1, C)
    logits = jnp.dot(m, head_w, preferred_element_type=f32) + head_b     # (1, C); cols >= NC are zero
    o_ref[0] = logits[:, 0:NUM_CLASSES]

# ----------------------------- host-side packing -----------------------------
def build_kernel_inputs(params):
    """Pack weights + DFT/shift constants into a few B-independent kernel inputs (done once)."""
    N, F, NP, C, H = NUM_PATCHES, NFREQ, N_PAD, EMB_DIM, HIDDEN

    # ortho rfft / irfft as real matmuls, padded to N_PAD token rows (pad rows/cols are zero)
    n = np.arange(N)
    k = np.arange(F)
    scale = 1.0 / np.sqrt(N)
    ang = 2.0 * np.pi * np.outer(k, n) / N
    dftf = np.zeros((2 * F, DFT_W), np.float32)
    dftf[:F, :N] = np.cos(ang) * scale                   # Re(rfft, ortho)
    dftf[F:, :N] = -np.sin(ang) * scale                  # Im(rfft, ortho)

    c = np.full(F, 2.0)
    c[0] = 1.0
    if N % 2 == 0:
        c[-1] = 1.0
    ang2 = 2.0 * np.pi * np.outer(n, k) / N
    idft = np.zeros((NP, 2 * F), np.float32)
    idft[:N, :F] = np.cos(ang2) * c[None, :] * scale     # irfft = [idr | idi] @ [Re; Im]
    idft[:N, F:] = -np.sin(ang2) * c[None, :] * scale
    idft_prev = np.zeros_like(idft)
    idft_prev[1:] = idft[:-1]                            # row i -> token i-1 (row 0 = zero pad)
    idft_next = np.zeros_like(idft)
    idft_next[:-1] = idft[1:]                            # row i -> token i+1 (edge = zero pad)
    inv_pad = np.zeros((3 * NP, DFT_W), np.float32)
    inv_pad[:, :2 * F] = np.concatenate([idft, idft_prev, idft_next], axis=0)
    dft_pack = np.concatenate([dftf, inv_pad], axis=0)   # (2F + 3*NP, DFT_W)

    layers = params['layers']

    # all (1, C) vectors packed into one array
    head_b_pad = jnp.zeros((1, C), jnp.float32).at[:, :NUM_CLASSES].set(params['head_b'])
    rows = [params['pe_b'], head_b_pad]
    for lp in layers:
        rows += [lp['g1'], lp['b1'], lp['g2'], lp['b2'],
                 lp['wre'], lp['wim'], lp['whre'], lp['whim'], lp['b3c']]
    vecc = jnp.concatenate(rows, axis=0)                 # (2 + 9*DEPTH, C)

    # fused ICB weight/bias: cols 0:H -> conv2 (k=3), cols X1_OFF:X1_OFF+H -> conv1 (1x1)
    wicb_list, icbb_list = [], []
    for lp in layers:
        W = jnp.zeros((3 * C, ICB_OUT), jnp.float32)
        W = W.at[0:C, 0:H].set(lp['w2'][0])              # tap multiplying y[n-1]
        W = W.at[C:2 * C, 0:H].set(lp['w2'][1])          # center tap
        W = W.at[2 * C:3 * C, 0:H].set(lp['w2'][2])      # tap multiplying y[n+1]
        W = W.at[C:2 * C, X1_OFF:X1_OFF + H].set(lp['w1'])
        wicb_list.append(W)
        bias = jnp.zeros((1, ICB_OUT), jnp.float32)
        bias = bias.at[:, 0:H].set(lp['b2h'])
        bias = bias.at[:, X1_OFF:X1_OFF + H].set(lp['b1h'])
        icbb_list.append(bias)
    wicb = jnp.stack(wicb_list, axis=0)                  # (DEPTH, 3C, ICB_OUT)
    icbb = jnp.concatenate(icbb_list, axis=0)            # (DEPTH, ICB_OUT)

    # all C-column weights packed: [pe_w; w3 per layer; head_w padded to C lanes]
    head_w_pad = jnp.zeros((C, C), jnp.float32).at[:, :NUM_CLASSES].set(params['head_w'])
    wsc = jnp.concatenate([params['pe_w']] + [lp['w3'] for lp in layers] + [head_w_pad], axis=0)

    thrs = jnp.stack([jnp.reshape(lp['thr'], ()) for lp in layers]).astype(jnp.float32)  # (DEPTH,)

    return {'dft': jnp.asarray(dft_pack), 'vecc': vecc, 'icbb': icbb,
            'wicb': wicb, 'wsc': wsc, 'thrs': thrs}

# ----------------------------- wrapper -----------------------------
@jax.jit
def tslanet_forward(inputs, x):
    """x: (B, 1, L) float32 -> logits (B, NUM_CLASSES). One batch element per grid step."""
    B = x.shape[0]
    sig = x[:, 0, :]
    # TODO(synk): strided patch extraction (Conv1d unfold) stays as XLA gather glue; doing it
    # in-kernel would need NUM_PATCHES tiny shifted slices for no gain at this size.
    idx = np.arange(NUM_PATCHES)[:, None] * STRIDE + np.arange(PATCH_SIZE)[None, :]
    patches = sig[:, idx]                                                 # (B, N, P)
    patches = jnp.pad(patches, ((0, 0), (0, N_PAD - NUM_PATCHES), (0, 0)))  # pad token rows to 16

    def cspec(shape):                                   # full-array spec shared across grid steps
        nd = len(shape)
        return pl.BlockSpec(shape, lambda b, _nd=nd: (0,) * _nd)

    in_specs = [
        pl.BlockSpec((1, N_PAD, PATCH_SIZE), lambda b: (b, 0, 0)),
        cspec(inputs['dft'].shape),
        cspec(inputs['vecc'].shape),
        cspec(inputs['icbb'].shape),
        cspec(inputs['wicb'].shape),
        cspec(inputs['wsc'].shape),
        pl.BlockSpec(memory_space=pltpu.MemorySpace.SMEM),   # per-layer thresholds (true scalars)
    ]
    out = pl.pallas_call(
        _tslanet_kernel,
        grid=(B,),
        in_specs=in_specs,
        out_specs=pl.BlockSpec((1, 1, NUM_CLASSES), lambda b: (b, 0, 0)),
        out_shape=jax.ShapeDtypeStruct((B, 1, NUM_CLASSES), jnp.float32),
        compiler_params=pltpu.CompilerParams(dimension_semantics=("parallel",)),
    )(patches, inputs['dft'], inputs['vecc'], inputs['icbb'], inputs['wicb'],
      inputs['wsc'], inputs['thrs'])
    return out[:, 0, :]

# ----------------------------- parameter init (deterministic, synthetic) -----------------------------
def init_params(key):
    keys = iter(jax.random.split(key, 64))
    nk = lambda: next(keys)
    rnd = lambda shape: jax.random.normal(nk(), shape, jnp.float32) * 0.02
    params = {
        'pe_w': rnd((PATCH_SIZE, EMB_DIM)),       # Conv1d(1, D, k=P, stride=P//2), transposed
        'pe_b': rnd((1, EMB_DIM)),
        'head_w': rnd((EMB_DIM, NUM_CLASSES)),
        'head_b': jnp.zeros((1, NUM_CLASSES), jnp.float32),
        'layers': [],
    }
    for _ in range(DEPTH):
        params['layers'].append({
            'g1': jnp.ones((1, EMB_DIM), jnp.float32),
            'b1': jnp.zeros((1, EMB_DIM), jnp.float32),
            'g2': jnp.ones((1, EMB_DIM), jnp.float32),
            'b2': jnp.zeros((1, EMB_DIM), jnp.float32),
            'wre': rnd((1, EMB_DIM)), 'wim': rnd((1, EMB_DIM)),      # complex_weight
            'whre': rnd((1, EMB_DIM)), 'whim': rnd((1, EMB_DIM)),    # complex_weight_high
            'thr': jax.random.uniform(nk(), (), jnp.float32),        # threshold_param
            'w1': rnd((EMB_DIM, HIDDEN)), 'b1h': rnd((1, HIDDEN)),   # conv1 (1x1), transposed
            'w2': rnd((3, EMB_DIM, HIDDEN)), 'b2h': rnd((1, HIDDEN)),# conv2 (k=3), per-tap transposed
            'w3': rnd((HIDDEN, EMB_DIM)), 'b3c': rnd((1, EMB_DIM)),  # conv3 (1x1), transposed
        })
    return params

# ----------------------------- pure-JAX reference (for validation) -----------------------------
def reference_forward(params, x):
    B = x.shape[0]
    sig = x[:, 0, :]
    idx = np.arange(NUM_PATCHES)[:, None] * STRIDE + np.arange(PATCH_SIZE)[None, :]
    h = sig[:, idx] @ params['pe_w'] + params['pe_b']

    def ln(v, g, b):
        mu = v.mean(-1, keepdims=True)
        var = ((v - mu) ** 2).mean(-1, keepdims=True)
        return (v - mu) / jnp.sqrt(var + LN_EPS) * g + b

    N, F = NUM_PATCHES, NFREQ
    for lp in params['layers']:
        y = ln(h, lp['g1'], lp['b1'])
        xf = jnp.fft.rfft(y, axis=1, norm='ortho')
        w = (lp['wre'] + 1j * lp['wim'])[0]
        xw = xf * w
        en = (jnp.abs(xf) ** 2).sum(-1)
        med = jnp.sort(en, axis=1)[:, (F - 1) // 2]
        mask = (en / (med[:, None] + 1e-6) > lp['thr']).astype(jnp.float32)[..., None]
        wh = (lp['whre'] + 1j * lp['whim'])[0]
        xw = xw + (xf * mask) * wh
        y2 = jnp.fft.irfft(xw, n=N, axis=1, norm='ortho')
        y2 = ln(y2, lp['g2'], lp['b2'])
        x1 = y2 @ lp['w1'] + lp['b1h']
        yp = jnp.pad(y2, ((0, 0), (1, 1), (0, 0)))
        x2 = (yp[:, :-2] @ lp['w2'][0] + yp[:, 1:-1] @ lp['w2'][1]
              + yp[:, 2:] @ lp['w2'][2] + lp['b2h'])
        g1v = jax.nn.gelu(x1, approximate=False)
        g2v = jax.nn.gelu(x2, approximate=False)
        h = h + (x1 * g2v + x2 * g1v) @ lp['w3'] + lp['b3c']
    return h.mean(1) @ params['head_w'] + params['head_b']

# ----------------------------- main -----------------------------
if __name__ == "__main__":
    key = jax.random.PRNGKey(0)
    pkey, xkey = jax.random.split(key)
    params = init_params(pkey)
    x = jax.random.normal(xkey, (2, 1, SAMPLE_RATE), jnp.float32)

    inputs = build_kernel_inputs(params)

    out = jax.block_until_ready(tslanet_forward(inputs, x))
    assert out.shape == (2, NUM_CLASSES)

    ref = jax.block_until_ready(reference_forward(params, x))
    if not np.allclose(np.asarray(out), np.asarray(ref), atol=2e-3, rtol=2e-2):
        diff = float(np.max(np.abs(np.asarray(out) - np.asarray(ref))))
        raise AssertionError(f"Pallas vs reference mismatch, max abs diff = {diff}")

    print("KERNEL_OK")
</pallas_src>

<mosaic_0001>
module attributes {stable_mosaic.version = 11 : i64} {
  func.func @_tslanet_kernel(%arg0: i32, %arg1: memref<1x16x8xf32, #tpu.memory_space<vmem>>, %arg2: memref<64x16xf32, #tpu.memory_space<vmem>>, %arg3: memref<20x32xf32, #tpu.memory_space<vmem>>, %arg4: memref<2x224xf32, #tpu.memory_space<vmem>>, %arg5: memref<2x96x224xf32, #tpu.memory_space<vmem>>, %arg6: memref<232x32xf32, #tpu.memory_space<vmem>>, %arg7: memref<2xf32, #tpu.memory_space<smem>>, %arg8: memref<1x1x5xf32, #tpu.memory_space<vmem>>) attributes {dimension_semantics = [#tpu.dimension_semantics<parallel>], iteration_bounds = array<i64: 2>, scalar_prefetch = 0 : i64, scratch_operands = 0 : i64, tpu.core_type = #tpu.core_type<tc>, window_params = [{transform_indices = @transform_0, window_bounds = array<i64: 1, 16, 8>}, {pipeline_mode = #tpu.pipeline_mode<synchronous>, transform_indices = @transform_1, window_bounds = array<i64: 64, 16>}, {pipeline_mode = #tpu.pipeline_mode<synchronous>, transform_indices = @transform_2, window_bounds = array<i64: 20, 32>}, {pipeline_mode = #tpu.pipeline_mode<synchronous>, transform_indices = @transform_3, window_bounds = array<i64: 2, 224>}, {pipeline_mode = #tpu.pipeline_mode<synchronous>, transform_indices = @transform_4, window_bounds = array<i64: 2, 96, 224>}, {pipeline_mode = #tpu.pipeline_mode<synchronous>, transform_indices = @transform_5, window_bounds = array<i64: 232, 32>}, {transform_indices = @transform_6, window_bounds = array<i64: 2>}, {transform_indices = @transform_7, window_bounds = array<i64: 1, 1, 5>}]} {
    %c0 = arith.constant 0 : index
    %c0_0 = arith.constant 0 : index
    %c0_1 = arith.constant 0 : index
    %0 = vector.load %arg1[%c0, %c0_0, %c0_1] : memref<1x16x8xf32, #tpu.memory_space<vmem>>, vector<1x16x8xf32>
    %1 = vector.shape_cast %0 : vector<1x16x8xf32> to vector<16x8xf32>
    %c0_2 = arith.constant 0 : index
    %c0_3 = arith.constant 0 : index
    %2 = vector.load %arg2[%c0_2, %c0_3] : memref<64x16xf32, #tpu.memory_space<vmem>>, vector<64x16xf32>
    %c0_4 = arith.constant 0 : index
    %c0_5 = arith.constant 0 : index
    %3 = vector.load %arg3[%c0_4, %c0_5] : memref<20x32xf32, #tpu.memory_space<vmem>>, vector<20x32xf32>
    %c0_6 = arith.constant 0 : index
    %c0_7 = arith.constant 0 : index
    %4 = vector.load %arg4[%c0_6, %c0_7] : memref<2x224xf32, #tpu.memory_space<vmem>>, vector<2x224xf32>
    %c0_8 = arith.constant 0 : index
    %c0_9 = arith.constant 0 : index
    %5 = vector.load %arg6[%c0_8, %c0_9] : memref<232x32xf32, #tpu.memory_space<vmem>>, vector<232x32xf32>
    %6 = vector.extract_strided_slice %2 {offsets = [0, 0], sizes = [16, 16], strides = [1, 1]} : vector<64x16xf32> to vector<16x16xf32>
    %7 = vector.extract_strided_slice %2 {offsets = [16, 0], sizes = [48, 16], strides = [1, 1]} : vector<64x16xf32> to vector<48x16xf32>
    %8 = vector.extract_strided_slice %5 {offsets = [0, 0], sizes = [8, 32], strides = [1, 1]} : vector<232x32xf32> to vector<8x32xf32>
    %9 = vector.extract_strided_slice %5 {offsets = [200, 0], sizes = [32, 32], strides = [1, 1]} : vector<232x32xf32> to vector<32x32xf32>
    %10 = vector.extract_strided_slice %3 {offsets = [0, 0], sizes = [1, 32], strides = [1, 1]} : vector<20x32xf32> to vector<1x32xf32>
    %11 = vector.extract_strided_slice %3 {offsets = [1, 0], sizes = [1, 32], strides = [1, 1]} : vector<20x32xf32> to vector<1x32xf32>
    %12 = tpu.iota {dimensions = array<i32: 0>} : vector<16x1xi32>
    %c15_i32 = arith.constant 15 : i32
    %13 = vector.broadcast %c15_i32 : i32 to vector<16x1xi32>
    %14 = arith.cmpi slt, %12, %13 : vector<16x1xi32>
    %15 = arith.extui %14 : vector<16x1xi1> to vector<16x1xi32>
    %16 = arith.sitofp %15 : vector<16x1xi32> to vector<16x1xf32>
    %c0_i32 = arith.constant 0 : i32
    %17 = vector.broadcast %c0_i32 : i32 to vector<16x1xi32>
    %18 = arith.cmpi sgt, %12, %17 : vector<16x1xi32>
    %19 = arith.extui %18 : vector<16x1xi1> to vector<16x1xi32>
    %20 = arith.sitofp %19 : vector<16x1xi32> to vector<16x1xf32>
    %c14_i32 = arith.constant 14 : i32
    %21 = vector.broadcast %c14_i32 : i32 to vector<16x1xi32>
    %22 = arith.cmpi ne, %12, %21 : vector<16x1xi32>
    %23 = arith.extui %22 : vector<16x1xi1> to vector<16x1xi32>
    %24 = arith.sitofp %23 : vector<16x1xi32> to vector<16x1xf32>
    %25 = tpu.iota {dimensions = array<i32: 0>} : vector<8x8xi32>
    %26 = tpu.iota {dimensions = array<i32: 1>} : vector<8x8xi32>
    %27 = arith.cmpi eq, %25, %26 : vector<8x8xi32>
    %28 = arith.extui %27 : vector<8x8xi1> to vector<8x8xi32>
    %29 = arith.sitofp %28 : vector<8x8xi32> to vector<8x8xf32>
    %30 = arith.cmpi slt, %25, %26 : vector<8x8xi32>
    %31 = arith.extui %30 : vector<8x8xi1> to vector<8x8xi32>
    %32 = arith.sitofp %31 : vector<8x8xi32> to vector<8x8xf32>
    %cst = arith.constant dense<0.000000e+00> : vector<16x32xf32>
    %33 = tpu.matmul %1, %8, %cst {dimension_numbers = #tpu.dot_dimension_numbers<[1], [0], [0], [1], [0, 0, 1, 1], [], []>} : vector<16x8xf32>, vector<8x32xf32>, vector<16x32xf32> -> vector<16x32xf32>
    %34 = vector.broadcast %10 : vector<1x32xf32> to vector<16x32xf32>
    %35 = arith.addf %33, %34 : vector<16x32xf32>
    %36 = vector.extract_strided_slice %3 {offsets = [2, 0], sizes = [1, 32], strides = [1, 1]} : vector<20x32xf32> to vector<1x32xf32>
    %37 = vector.extract_strided_slice %3 {offsets = [3, 0], sizes = [1, 32], strides = [1, 1]} : vector<20x32xf32> to vector<1x32xf32>
    %38 = vector.extract_strided_slice %3 {offsets = [4, 0], sizes = [1, 32], strides = [1, 1]} : vector<20x32xf32> to vector<1x32xf32>
    %39 = vector.extract_strided_slice %3 {offsets = [5, 0], sizes = [1, 32], strides = [1, 1]} : vector<20x32xf32> to vector<1x32xf32>
    %40 = vector.extract_strided_slice %3 {offsets = [6, 0], sizes = [1, 32], strides = [1, 1]} : vector<20x32xf32> to vector<1x32xf32>
    %41 = vector.extract_strided_slice %3 {offsets = [7, 0], sizes = [1, 32], strides = [1, 1]} : vector<20x32xf32> to vector<1x32xf32>
    %42 = vector.extract_strided_slice %3 {offsets = [8, 0], sizes = [1, 32], strides = [1, 1]} : vector<20x32xf32> to vector<1x32xf32>
    %43 = vector.extract_strided_slice %3 {offsets = [9, 0], sizes = [1, 32], strides = [1, 1]} : vector<20x32xf32> to vector<1x32xf32>
    %44 = vector.extract_strided_slice %3 {offsets = [10, 0], sizes = [1, 32], strides = [1, 1]} : vector<20x32xf32> to vector<1x32xf32>
    %c0_10 = arith.constant 0 : index
    %45 = memref.load %arg7[%c0_10] : memref<2xf32, #tpu.memory_space<smem>>
    %46 = vector.extract_strided_slice %5 {offsets = [8, 0], sizes = [96, 32], strides = [1, 1]} : vector<232x32xf32> to vector<96x32xf32>
    %c0_11 = arith.constant 0 : index
    %c0_12 = arith.constant 0 : index
    %c0_13 = arith.constant 0 : index
    %47 = vector.load %arg5[%c0_11, %c0_12, %c0_13] : memref<2x96x224xf32, #tpu.memory_space<vmem>>, vector<1x96x224xf32>
    %48 = vector.shape_cast %47 : vector<1x96x224xf32> to vector<96x224xf32>
    %cst_14 = arith.constant dense<0.000000e+00> : vector<16xf32>
    %49 = vector.multi_reduction <add>, %35, %cst_14 [1] : vector<16x32xf32> to vector<16xf32>
    %50 = vector.shape_cast %49 : vector<16xf32> to vector<16x1xf32>
    %cst_15 = arith.constant 3.200000e+01 : f32
    %51 = vector.broadcast %cst_15 : f32 to vector<16x1xf32>
    %52 = arith.divf %50, %51 : vector<16x1xf32>
    %53 = vector.broadcast %52 : vector<16x1xf32> to vector<16x32xf32>
    %54 = arith.subf %35, %53 : vector<16x32xf32>
    %55 = arith.mulf %54, %54 : vector<16x32xf32>
    %cst_16 = arith.constant dense<0.000000e+00> : vector<16xf32>
    %56 = vector.multi_reduction <add>, %55, %cst_16 [1] : vector<16x32xf32> to vector<16xf32>
    %57 = vector.shape_cast %56 : vector<16xf32> to vector<16x1xf32>
    %cst_17 = arith.constant 3.200000e+01 : f32
    %58 = vector.broadcast %cst_17 : f32 to vector<16x1xf32>
    %59 = arith.divf %57, %58 : vector<16x1xf32>
    %60 = vector.broadcast %52 : vector<16x1xf32> to vector<16x32xf32>
    %61 = arith.subf %35, %60 : vector<16x32xf32>
    %cst_18 = arith.constant 9.99999974E-6 : f32
    %62 = vector.broadcast %cst_18 : f32 to vector<16x1xf32>
    %63 = arith.addf %59, %62 : vector<16x1xf32>
    %64 = math.rsqrt %63 : vector<16x1xf32>
    %65 = vector.broadcast %64 : vector<16x1xf32> to vector<16x32xf32>
    %66 = arith.mulf %61, %65 : vector<16x32xf32>
    %67 = vector.broadcast %36 : vector<1x32xf32> to vector<16x32xf32>
    %68 = arith.mulf %66, %67 : vector<16x32xf32>
    %69 = vector.broadcast %37 : vector<1x32xf32> to vector<16x32xf32>
    %70 = arith.addf %68, %69 : vector<16x32xf32>
    %cst_19 = arith.constant dense<0.000000e+00> : vector<16x32xf32>
    %71 = tpu.matmul %6, %70, %cst_19 {dimension_numbers = #tpu.dot_dimension_numbers<[1], [0], [0], [1], [0, 0, 1, 1], [], []>} : vector<16x16xf32>, vector<16x32xf32>, vector<16x32xf32> -> vector<16x32xf32>
    %72 = vector.extract_strided_slice %71 {offsets = [0, 0], sizes = [8, 32], strides = [1, 1]} : vector<16x32xf32> to vector<8x32xf32>
    %73 = vector.extract_strided_slice %71 {offsets = [8, 0], sizes = [8, 32], strides = [1, 1]} : vector<16x32xf32> to vector<8x32xf32>
    %74 = arith.mulf %72, %72 : vector<8x32xf32>
    %75 = arith.mulf %73, %73 : vector<8x32xf32>
    %76 = arith.addf %74, %75 : vector<8x32xf32>
    %cst_20 = arith.constant dense<0.000000e+00> : vector<8xf32>
    %77 = vector.multi_reduction <add>, %76, %cst_20 [1] : vector<8x32xf32> to vector<8xf32>
    %78 = vector.shape_cast %77 : vector<8xf32> to vector<8x1xf32>
    %79 = vector.broadcast %78 : vector<8x1xf32> to vector<8x8xf32>
    %80 = arith.mulf %29, %79 : vector<8x8xf32>
    %cst_21 = arith.constant dense<0.000000e+00> : vector<8xf32>
    %81 = vector.multi_reduction <add>, %80, %cst_21 [0] : vector<8x8xf32> to vector<8xf32>
    %82 = vector.shape_cast %81 : vector<8xf32> to vector<1x8xf32>
    %83 = vector.broadcast %78 : vector<8x1xf32> to vector<8x8xf32>
    %84 = vector.broadcast %82 : vector<1x8xf32> to vector<8x8xf32>
    %85 = arith.cmpf olt, %83, %84 : vector<8x8xf32>
    %86 = arith.extui %85 : vector<8x8xi1> to vector<8x8xi32>
    %87 = arith.sitofp %86 : vector<8x8xi32> to vector<8x8xf32>
    %88 = vector.broadcast %78 : vector<8x1xf32> to vector<8x8xf32>
    %89 = vector.broadcast %82 : vector<1x8xf32> to vector<8x8xf32>
    %90 = arith.cmpf oeq, %88, %89 : vector<8x8xf32>
    %91 = arith.extui %90 : vector<8x8xi1> to vector<8x8xi32>
    %92 = arith.sitofp %91 : vector<8x8xi32> to vector<8x8xf32>
    %93 = arith.mulf %32, %92 : vector<8x8xf32>
    %94 = arith.addf %87, %93 : vector<8x8xf32>
    %cst_22 = arith.constant dense<0.000000e+00> : vector<8xf32>
    %95 = vector.multi_reduction <add>, %94, %cst_22 [0] : vector<8x8xf32> to vector<8xf32>
    %96 = vector.shape_cast %95 : vector<8xf32> to vector<1x8xf32>
    %cst_23 = arith.constant 3.000000e+00 : f32
    %97 = vector.broadcast %cst_23 : f32 to vector<1x8xf32>
    %98 = arith.cmpf oeq, %96, %97 : vector<1x8xf32>
    %99 = arith.extui %98 : vector<1x8xi1> to vector<1x8xi32>
    %100 = arith.sitofp %99 : vector<1x8xi32> to vector<1x8xf32>
    %101 = arith.mulf %82, %100 : vector<1x8xf32>
    %cst_24 = arith.constant dense<0.000000e+00> : vector<1xf32>
    %102 = vector.multi_reduction <add>, %101, %cst_24 [1] : vector<1x8xf32> to vector<1xf32>
    %103 = vector.shape_cast %102 : vector<1xf32> to vector<1x1xf32>
    %cst_25 = arith.constant 9.99999997E-7 : f32
    %104 = vector.broadcast %cst_25 : f32 to vector<1x1xf32>
    %105 = arith.addf %103, %104 : vector<1x1xf32>
    %106 = vector.broadcast %105 : vector<1x1xf32> to vector<8x1xf32>
    %107 = arith.divf %78, %106 : vector<8x1xf32>
    %108 = vector.broadcast %45 : f32 to vector<8x1xf32>
    %109 = arith.cmpf ogt, %107, %108 : vector<8x1xf32>
    %110 = arith.extui %109 : vector<8x1xi1> to vector<8x1xi32>
    %111 = arith.sitofp %110 : vector<8x1xi32> to vector<8x1xf32>
    %112 = vector.broadcast %111 : vector<8x1xf32> to vector<8x32xf32>
    %113 = arith.mulf %72, %112 : vector<8x32xf32>
    %114 = vector.broadcast %111 : vector<8x1xf32> to vector<8x32xf32>
    %115 = arith.mulf %73, %114 : vector<8x32xf32>
    %116 = vector.broadcast %40 : vector<1x32xf32> to vector<8x32xf32>
    %117 = arith.mulf %72, %116 : vector<8x32xf32>
    %118 = vector.broadcast %41 : vector<1x32xf32> to vector<8x32xf32>
    %119 = arith.mulf %73, %118 : vector<8x32xf32>
    %120 = arith.subf %117, %119 : vector<8x32xf32>
    %121 = vector.broadcast %42 : vector<1x32xf32> to vector<8x32xf32>
    %122 = arith.mulf %113, %121 : vector<8x32xf32>
    %123 = arith.addf %120, %122 : vector<8x32xf32>
    %124 = vector.broadcast %43 : vector<1x32xf32> to vector<8x32xf32>
    %125 = arith.mulf %115, %124 : vector<8x32xf32>
    %126 = arith.subf %123, %125 : vector<8x32xf32>
    %127 = vector.broadcast %41 : vector<1x32xf32> to vector<8x32xf32>
    %128 = arith.mulf %72, %127 : vector<8x32xf32>
    %129 = vector.broadcast %40 : vector<1x32xf32> to vector<8x32xf32>
    %130 = arith.mulf %73, %129 : vector<8x32xf32>
    %131 = arith.addf %128, %130 : vector<8x32xf32>
    %132 = vector.broadcast %43 : vector<1x32xf32> to vector<8x32xf32>
    %133 = arith.mulf %113, %132 : vector<8x32xf32>
    %134 = arith.addf %131, %133 : vector<8x32xf32>
    %135 = vector.broadcast %42 : vector<1x32xf32> to vector<8x32xf32>
    %136 = arith.mulf %115, %135 : vector<8x32xf32>
    %137 = arith.addf %134, %136 : vector<8x32xf32>
    %138 = tpu.concatenate %126, %137 in 0 : vector<8x32xf32>, vector<8x32xf32> -> vector<16x32xf32>
    %cst_26 = arith.constant dense<0.000000e+00> : vector<48x32xf32>
    %139 = tpu.matmul %7, %138, %cst_26 {dimension_numbers = #tpu.dot_dimension_numbers<[1], [0], [0], [1], [0, 0, 1, 1], [], []>} : vector<48x16xf32>, vector<16x32xf32>, vector<48x32xf32> -> vector<48x32xf32>
    %cst_27 = arith.constant dense<0.000000e+00> : vector<48xf32>
    %140 = vector.multi_reduction <add>, %139, %cst_27 [1] : vector<48x32xf32> to vector<48xf32>
    %141 = vector.shape_cast %140 : vector<48xf32> to vector<48x1xf32>
    %cst_28 = arith.constant 3.200000e+01 : f32
    %142 = vector.broadcast %cst_28 : f32 to vector<48x1xf32>
    %143 = arith.divf %141, %142 : vector<48x1xf32>
    %144 = vector.broadcast %143 : vector<48x1xf32> to vector<48x32xf32>
    %145 = arith.subf %139, %144 : vector<48x32xf32>
    %146 = arith.mulf %145, %145 : vector<48x32xf32>
    %cst_29 = arith.constant dense<0.000000e+00> : vector<48xf32>
    %147 = vector.multi_reduction <add>, %146, %cst_29 [1] : vector<48x32xf32> to vector<48xf32>
    %148 = vector.shape_cast %147 : vector<48xf32> to vector<48x1xf32>
    %cst_30 = arith.constant 3.200000e+01 : f32
    %149 = vector.broadcast %cst_30 : f32 to vector<48x1xf32>
    %150 = arith.divf %148, %149 : vector<48x1xf32>
    %151 = vector.broadcast %143 : vector<48x1xf32> to vector<48x32xf32>
    %152 = arith.subf %139, %151 : vector<48x32xf32>
    %cst_31 = arith.constant 9.99999974E-6 : f32
    %153 = vector.broadcast %cst_31 : f32 to vector<48x1xf32>
    %154 = arith.addf %150, %153 : vector<48x1xf32>
    %155 = math.rsqrt %154 : vector<48x1xf32>
    %156 = vector.broadcast %155 : vector<48x1xf32> to vector<48x32xf32>
    %157 = arith.mulf %152, %156 : vector<48x32xf32>
    %158 = vector.broadcast %38 : vector<1x32xf32> to vector<48x32xf32>
    %159 = arith.mulf %157, %158 : vector<48x32xf32>
    %160 = vector.broadcast %39 : vector<1x32xf32> to vector<48x32xf32>
    %161 = arith.addf %159, %160 : vector<48x32xf32>
    %162 = vector.extract_strided_slice %161 {offsets = [0, 0], sizes = [16, 32], strides = [1, 1]} : vector<48x32xf32> to vector<16x32xf32>
    %163 = vector.extract_strided_slice %161 {offsets = [16, 0], sizes = [16, 32], strides = [1, 1]} : vector<48x32xf32> to vector<16x32xf32>
    %164 = vector.broadcast %20 : vector<16x1xf32> to vector<16x32xf32>
    %165 = arith.mulf %163, %164 : vector<16x32xf32>
    %166 = vector.extract_strided_slice %161 {offsets = [32, 0], sizes = [16, 32], strides = [1, 1]} : vector<48x32xf32> to vector<16x32xf32>
    %167 = vector.broadcast %24 : vector<16x1xf32> to vector<16x32xf32>
    %168 = arith.mulf %166, %167 : vector<16x32xf32>
    %169 = vector.extract_strided_slice %48 {offsets = [0, 0], sizes = [32, 224], strides = [1, 1]} : vector<96x224xf32> to vector<32x224xf32>
    %cst_32 = arith.constant dense<0.000000e+00> : vector<16x224xf32>
    %170 = tpu.matmul %165, %169, %cst_32 {dimension_numbers = #tpu.dot_dimension_numbers<[1], [0], [0], [1], [0, 0, 1, 1], [], []>} : vector<16x32xf32>, vector<32x224xf32>, vector<16x224xf32> -> vector<16x224xf32>
    %171 = vector.extract_strided_slice %48 {offsets = [32, 0], sizes = [32, 224], strides = [1, 1]} : vector<96x224xf32> to vector<32x224xf32>
    %cst_33 = arith.constant dense<0.000000e+00> : vector<16x224xf32>
    %172 = tpu.matmul %162, %171, %cst_33 {dimension_numbers = #tpu.dot_dimension_numbers<[1], [0], [0], [1], [0, 0, 1, 1], [], []>} : vector<16x32xf32>, vector<32x224xf32>, vector<16x224xf32> -> vector<16x224xf32>
    %173 = arith.addf %170, %172 : vector<16x224xf32>
    %174 = vector.extract_strided_slice %48 {offsets = [64, 0], sizes = [32, 224], strides = [1, 1]} : vector<96x224xf32> to vector<32x224xf32>
    %cst_34 = arith.constant dense<0.000000e+00> : vector<16x224xf32>
    %175 = tpu.matmul %168, %174, %cst_34 {dimension_numbers = #tpu.dot_dimension_numbers<[1], [0], [0], [1], [0, 0, 1, 1], [], []>} : vector<16x32xf32>, vector<32x224xf32>, vector<16x224xf32> -> vector<16x224xf32>
    %176 = arith.addf %173, %175 : vector<16x224xf32>
    %177 = vector.extract_strided_slice %4 {offsets = [0, 0], sizes = [1, 224], strides = [1, 1]} : vector<2x224xf32> to vector<1x224xf32>
    %178 = vector.broadcast %177 : vector<1x224xf32> to vector<16x224xf32>
    %179 = arith.addf %176, %178 : vector<16x224xf32>
    %180 = vector.extract_strided_slice %179 {offsets = [0, 0], sizes = [16, 96], strides = [1, 1]} : vector<16x224xf32> to vector<16x96xf32>
    %181 = vector.extract_strided_slice %179 {offsets = [0, 128], sizes = [16, 96], strides = [1, 1]} : vector<16x224xf32> to vector<16x96xf32>
    %cst_35 = arith.constant 5.000000e-01 : f32
    %182 = vector.broadcast %cst_35 : f32 to vector<16x96xf32>
    %183 = arith.mulf %182, %180 : vector<16x96xf32>
    %cst_36 = arith.constant 0.707106769 : f32
    %184 = vector.broadcast %cst_36 : f32 to vector<16x96xf32>
    %185 = arith.mulf %180, %184 : vector<16x96xf32>
    %cst_37 = arith.constant 0.000000e+00 : f32
    %186 = vector.broadcast %cst_37 : f32 to vector<16x96xf32>
    %187 = arith.cmpf oge, %185, %186 : vector<16x96xf32>
    %cst_38 = arith.constant 1.000000e+00 : f32
    %cst_39 = arith.constant -1.000000e+00 : f32
    %188 = vector.broadcast %cst_38 : f32 to vector<16x96xf32>
    %189 = vector.broadcast %cst_39 : f32 to vector<16x96xf32>
    %190 = arith.select %187, %188, %189 : vector<16x96xi1>, vector<16x96xf32>
    %191 = math.absf %185 : vector<16x96xf32>
    %cst_40 = arith.constant 0.327591091 : f32
    %192 = vector.broadcast %cst_40 : f32 to vector<16x96xf32>
    %193 = arith.mulf %192, %191 : vector<16x96xf32>
    %cst_41 = arith.constant 1.000000e+00 : f32
    %194 = vector.broadcast %cst_41 : f32 to vector<16x96xf32>
    %195 = arith.addf %194, %193 : vector<16x96xf32>
    %cst_42 = arith.constant 1.000000e+00 : f32
    %196 = vector.broadcast %cst_42 : f32 to vector<16x96xf32>
    %197 = arith.divf %196, %195 : vector<16x96xf32>
    %cst_43 = arith.constant 1.06140542 : f32
    %198 = vector.broadcast %cst_43 : f32 to vector<16x96xf32>
    %199 = arith.mulf %197, %198 : vector<16x96xf32>
    %cst_44 = arith.constant -1.45315206 : f32
    %200 = vector.broadcast %cst_44 : f32 to vector<16x96xf32>
    %201 = arith.addf %200, %199 : vector<16x96xf32>
    %202 = arith.mulf %197, %201 : vector<16x96xf32>
    %cst_45 = arith.constant 1.42141378 : f32
    %203 = vector.broadcast %cst_45 : f32 to vector<16x96xf32>
    %204 = arith.addf %203, %202 : vector<16x96xf32>
    %205 = arith.mulf %197, %204 : vector<16x96xf32>
    %cst_46 = arith.constant -0.284496725 : f32
    %206 = vector.broadcast %cst_46 : f32 to vector<16x96xf32>
    %207 = arith.addf %206, %205 : vector<16x96xf32>
    %208 = arith.mulf %197, %207 : vector<16x96xf32>
    %cst_47 = arith.constant 0.254829586 : f32
    %209 = vector.broadcast %cst_47 : f32 to vector<16x96xf32>
    %210 = arith.addf %209, %208 : vector<16x96xf32>
    %211 = arith.mulf %197, %210 : vector<16x96xf32>
    %cst_48 = arith.constant 0.000000e+00 : f32
    %212 = vector.broadcast %cst_48 : f32 to vector<16x96xf32>
    %213 = arith.subf %212, %191 : vector<16x96xf32>
    %214 = arith.mulf %213, %191 : vector<16x96xf32>
    %215 = math.exp %214 : vector<16x96xf32>
    %216 = arith.mulf %211, %215 : vector<16x96xf32>
    %cst_49 = arith.constant 1.000000e+00 : f32
    %217 = vector.broadcast %cst_49 : f32 to vector<16x96xf32>
    %218 = arith.subf %217, %216 : vector<16x96xf32>
    %219 = arith.mulf %190, %218 : vector<16x96xf32>
    %cst_50 = arith.constant 1.000000e+00 : f32
    %220 = vector.broadcast %cst_50 : f32 to vector<16x96xf32>
    %221 = arith.addf %220, %219 : vector<16x96xf32>
    %222 = arith.mulf %183, %221 : vector<16x96xf32>
    %223 = arith.mulf %181, %222 : vector<16x96xf32>
    %cst_51 = arith.constant 5.000000e-01 : f32
    %224 = vector.broadcast %cst_51 : f32 to vector<16x96xf32>
    %225 = arith.mulf %224, %181 : vector<16x96xf32>
    %cst_52 = arith.constant 0.707106769 : f32
    %226 = vector.broadcast %cst_52 : f32 to vector<16x96xf32>
    %227 = arith.mulf %181, %226 : vector<16x96xf32>
    %cst_53 = arith.constant 0.000000e+00 : f32
    %228 = vector.broadcast %cst_53 : f32 to vector<16x96xf32>
    %229 = arith.cmpf oge, %227, %228 : vector<16x96xf32>
    %cst_54 = arith.constant 1.000000e+00 : f32
    %cst_55 = arith.constant -1.000000e+00 : f32
    %230 = vector.broadcast %cst_54 : f32 to vector<16x96xf32>
    %231 = vector.broadcast %cst_55 : f32 to vector<16x96xf32>
    %232 = arith.select %229, %230, %231 : vector<16x96xi1>, vector<16x96xf32>
    %233 = math.absf %227 : vector<16x96xf32>
    %cst_56 = arith.constant 0.327591091 : f32
    %234 = vector.broadcast %cst_56 : f32 to vector<16x96xf32>
    %235 = arith.mulf %234, %233 : vector<16x96xf32>
    %cst_57 = arith.constant 1.000000e+00 : f32
    %236 = vector.broadcast %cst_57 : f32 to vector<16x96xf32>
    %237 = arith.addf %236, %235 : vector<16x96xf32>
    %cst_58 = arith.constant 1.000000e+00 : f32
    %238 = vector.broadcast %cst_58 : f32 to vector<16x96xf32>
    %239 = arith.divf %238, %237 : vector<16x96xf32>
    %cst_59 = arith.constant 1.06140542 : f32
    %240 = vector.broadcast %cst_59 : f32 to vector<16x96xf32>
    %241 = arith.mulf %239, %240 : vector<16x96xf32>
    %cst_60 = arith.constant -1.45315206 : f32
    %242 = vector.broadcast %cst_60 : f32 to vector<16x96xf32>
    %243 = arith.addf %242, %241 : vector<16x96xf32>
    %244 = arith.mulf %239, %243 : vector<16x96xf32>
    %cst_61 = arith.constant 1.42141378 : f32
    %245 = vector.broadcast %cst_61 : f32 to vector<16x96xf32>
    %246 = arith.addf %245, %244 : vector<16x96xf32>
    %247 = arith.mulf %239, %246 : vector<16x96xf32>
    %cst_62 = arith.constant -0.284496725 : f32
    %248 = vector.broadcast %cst_62 : f32 to vector<16x96xf32>
    %249 = arith.addf %248, %247 : vector<16x96xf32>
    %250 = arith.mulf %239, %249 : vector<16x96xf32>
    %cst_63 = arith.constant 0.254829586 : f32
    %251 = vector.broadcast %cst_63 : f32 to vector<16x96xf32>
    %252 = arith.addf %251, %250 : vector<16x96xf32>
    %253 = arith.mulf %239, %252 : vector<16x96xf32>
    %cst_64 = arith.constant 0.000000e+00 : f32
    %254 = vector.broadcast %cst_64 : f32 to vector<16x96xf32>
    %255 = arith.subf %254, %233 : vector<16x96xf32>
    %256 = arith.mulf %255, %233 : vector<16x96xf32>
    %257 = math.exp %256 : vector<16x96xf32>
    %258 = arith.mulf %253, %257 : vector<16x96xf32>
    %cst_65 = arith.constant 1.000000e+00 : f32
    %259 = vector.broadcast %cst_65 : f32 to vector<16x96xf32>
    %260 = arith.subf %259, %258 : vector<16x96xf32>
    %261 = arith.mulf %232, %260 : vector<16x96xf32>
    %cst_66 = arith.constant 1.000000e+00 : f32
    %262 = vector.broadcast %cst_66 : f32 to vector<16x96xf32>
    %263 = arith.addf %262, %261 : vector<16x96xf32>
    %264 = arith.mulf %225, %263 : vector<16x96xf32>
    %265 = arith.mulf %180, %264 : vector<16x96xf32>
    %266 = arith.addf %223, %265 : vector<16x96xf32>
    %cst_67 = arith.constant dense<0.000000e+00> : vector<16x32xf32>
    %267 = tpu.matmul %266, %46, %cst_67 {dimension_numbers = #tpu.dot_dimension_numbers<[1], [0], [0], [1], [0, 0, 1, 1], [], []>} : vector<16x96xf32>, vector<96x32xf32>, vector<16x32xf32> -> vector<16x32xf32>
    %268 = arith.addf %35, %267 : vector<16x32xf32>
    %269 = vector.broadcast %44 : vector<1x32xf32> to vector<16x32xf32>
    %270 = arith.addf %268, %269 : vector<16x32xf32>
    %271 = vector.extract_strided_slice %3 {offsets = [11, 0], sizes = [1, 32], strides = [1, 1]} : vector<20x32xf32> to vector<1x32xf32>
    %272 = vector.extract_strided_slice %3 {offsets = [12, 0], sizes = [1, 32], strides = [1, 1]} : vector<20x32xf32> to vector<1x32xf32>
    %273 = vector.extract_strided_slice %3 {offsets = [13, 0], sizes = [1, 32], strides = [1, 1]} : vector<20x32xf32> to vector<1x32xf32>
    %274 = vector.extract_strided_slice %3 {offsets = [14, 0], sizes = [1, 32], strides = [1, 1]} : vector<20x32xf32> to vector<1x32xf32>
    %275 = vector.extract_strided_slice %3 {offsets = [15, 0], sizes = [1, 32], strides = [1, 1]} : vector<20x32xf32> to vector<1x32xf32>
    %276 = vector.extract_strided_slice %3 {offsets = [16, 0], sizes = [1, 32], strides = [1, 1]} : vector<20x32xf32> to vector<1x32xf32>
    %277 = vector.extract_strided_slice %3 {offsets = [17, 0], sizes = [1, 32], strides = [1, 1]} : vector<20x32xf32> to vector<1x32xf32>
    %278 = vector.extract_strided_slice %3 {offsets = [18, 0], sizes = [1, 32], strides = [1, 1]} : vector<20x32xf32> to vector<1x32xf32>
    %279 = vector.extract_strided_slice %3 {offsets = [19, 0], sizes = [1, 32], strides = [1, 1]} : vector<20x32xf32> to vector<1x32xf32>
    %c1 = arith.constant 1 : index
    %280 = memref.load %arg7[%c1] : memref<2xf32, #tpu.memory_space<smem>>
    %281 = vector.extract_strided_slice %5 {offsets = [104, 0], sizes = [96, 32], strides = [1, 1]} : vector<232x32xf32> to vector<96x32xf32>
    %c1_68 = arith.constant 1 : index
    %c0_69 = arith.constant 0 : index
    %c0_70 = arith.constant 0 : index
    %282 = vector.load %arg5[%c1_68, %c0_69, %c0_70] : memref<2x96x224xf32, #tpu.memory_space<vmem>>, vector<1x96x224xf32>
    %283 = vector.shape_cast %282 : vector<1x96x224xf32> to vector<96x224xf32>
    %cst_71 = arith.constant dense<0.000000e+00> : vector<16xf32>
    %284 = vector.multi_reduction <add>, %270, %cst_71 [1] : vector<16x32xf32> to vector<16xf32>
    %285 = vector.shape_cast %284 : vector<16xf32> to vector<16x1xf32>
    %cst_72 = arith.constant 3.200000e+01 : f32
    %286 = vector.broadcast %cst_72 : f32 to vector<16x1xf32>
    %287 = arith.divf %285, %286 : vector<16x1xf32>
    %288 = vector.broadcast %287 : vector<16x1xf32> to vector<16x32xf32>
    %289 = arith.subf %270, %288 : vector<16x32xf32>
    %290 = arith.mulf %289, %289 : vector<16x32xf32>
    %cst_73 = arith.constant dense<0.000000e+00> : vector<16xf32>
    %291 = vector.multi_reduction <add>, %290, %cst_73 [1] : vector<16x32xf32> to vector<16xf32>
    %292 = vector.shape_cast %291 : vector<16xf32> to vector<16x1xf32>
    %cst_74 = arith.constant 3.200000e+01 : f32
    %293 = vector.broadcast %cst_74 : f32 to vector<16x1xf32>
    %294 = arith.divf %292, %293 : vector<16x1xf32>
    %295 = vector.broadcast %287 : vector<16x1xf32> to vector<16x32xf32>
    %296 = arith.subf %270, %295 : vector<16x32xf32>
    %cst_75 = arith.constant 9.99999974E-6 : f32
    %297 = vector.broadcast %cst_75 : f32 to vector<16x1xf32>
    %298 = arith.addf %294, %297 : vector<16x1xf32>
    %299 = math.rsqrt %298 : vector<16x1xf32>
    %300 = vector.broadcast %299 : vector<16x1xf32> to vector<16x32xf32>
    %301 = arith.mulf %296, %300 : vector<16x32xf32>
    %302 = vector.broadcast %271 : vector<1x32xf32> to vector<16x32xf32>
    %303 = arith.mulf %301, %302 : vector<16x32xf32>
    %304 = vector.broadcast %272 : vector<1x32xf32> to vector<16x32xf32>
    %305 = arith.addf %303, %304 : vector<16x32xf32>
    %cst_76 = arith.constant dense<0.000000e+00> : vector<16x32xf32>
    %306 = tpu.matmul %6, %305, %cst_76 {dimension_numbers = #tpu.dot_dimension_numbers<[1], [0], [0], [1], [0, 0, 1, 1], [], []>} : vector<16x16xf32>, vector<16x32xf32>, vector<16x32xf32> -> vector<16x32xf32>
    %307 = vector.extract_strided_slice %306 {offsets = [0, 0], sizes = [8, 32], strides = [1, 1]} : vector<16x32xf32> to vector<8x32xf32>
    %308 = vector.extract_strided_slice %306 {offsets = [8, 0], sizes = [8, 32], strides = [1, 1]} : vector<16x32xf32> to vector<8x32xf32>
    %309 = arith.mulf %307, %307 : vector<8x32xf32>
    %310 = arith.mulf %308, %308 : vector<8x32xf32>
    %311 = arith.addf %309, %310 : vector<8x32xf32>
    %cst_77 = arith.constant dense<0.000000e+00> : vector<8xf32>
    %312 = vector.multi_reduction <add>, %311, %cst_77 [1] : vector<8x32xf32> to vector<8xf32>
    %313 = vector.shape_cast %312 : vector<8xf32> to vector<8x1xf32>
    %314 = vector.broadcast %313 : vector<8x1xf32> to vector<8x8xf32>
    %315 = arith.mulf %29, %314 : vector<8x8xf32>
    %cst_78 = arith.constant dense<0.000000e+00> : vector<8xf32>
    %316 = vector.multi_reduction <add>, %315, %cst_78 [0] : vector<8x8xf32> to vector<8xf32>
    %317 = vector.shape_cast %316 : vector<8xf32> to vector<1x8xf32>
    %318 = vector.broadcast %313 : vector<8x1xf32> to vector<8x8xf32>
    %319 = vector.broadcast %317 : vector<1x8xf32> to vector<8x8xf32>
    %320 = arith.cmpf olt, %318, %319 : vector<8x8xf32>
    %321 = arith.extui %320 : vector<8x8xi1> to vector<8x8xi32>
    %322 = arith.sitofp %321 : vector<8x8xi32> to vector<8x8xf32>
    %323 = vector.broadcast %313 : vector<8x1xf32> to vector<8x8xf32>
    %324 = vector.broadcast %317 : vector<1x8xf32> to vector<8x8xf32>
    %325 = arith.cmpf oeq, %323, %324 : vector<8x8xf32>
    %326 = arith.extui %325 : vector<8x8xi1> to vector<8x8xi32>
    %327 = arith.sitofp %326 : vector<8x8xi32> to vector<8x8xf32>
    %328 = arith.mulf %32, %327 : vector<8x8xf32>
    %329 = arith.addf %322, %328 : vector<8x8xf32>
    %cst_79 = arith.constant dense<0.000000e+00> : vector<8xf32>
    %330 = vector.multi_reduction <add>, %329, %cst_79 [0] : vector<8x8xf32> to vector<8xf32>
    %331 = vector.shape_cast %330 : vector<8xf32> to vector<1x8xf32>
    %cst_80 = arith.constant 3.000000e+00 : f32
    %332 = vector.broadcast %cst_80 : f32 to vector<1x8xf32>
    %333 = arith.cmpf oeq, %331, %332 : vector<1x8xf32>
    %334 = arith.extui %333 : vector<1x8xi1> to vector<1x8xi32>
    %335 = arith.sitofp %334 : vector<1x8xi32> to vector<1x8xf32>
    %336 = arith.mulf %317, %335 : vector<1x8xf32>
    %cst_81 = arith.constant dense<0.000000e+00> : vector<1xf32>
    %337 = vector.multi_reduction <add>, %336, %cst_81 [1] : vector<1x8xf32> to vector<1xf32>
    %338 = vector.shape_cast %337 : vector<1xf32> to vector<1x1xf32>
    %cst_82 = arith.constant 9.99999997E-7 : f32
    %339 = vector.broadcast %cst_82 : f32 to vector<1x1xf32>
    %340 = arith.addf %338, %339 : vector<1x1xf32>
    %341 = vector.broadcast %340 : vector<1x1xf32> to vector<8x1xf32>
    %342 = arith.divf %313, %341 : vector<8x1xf32>
    %343 = vector.broadcast %280 : f32 to vector<8x1xf32>
    %344 = arith.cmpf ogt, %342, %343 : vector<8x1xf32>
    %345 = arith.extui %344 : vector<8x1xi1> to vector<8x1xi32>
    %346 = arith.sitofp %345 : vector<8x1xi32> to vector<8x1xf32>
    %347 = vector.broadcast %346 : vector<8x1xf32> to vector<8x32xf32>
    %348 = arith.mulf %307, %347 : vector<8x32xf32>
    %349 = vector.broadcast %346 : vector<8x1xf32> to vector<8x32xf32>
    %350 = arith.mulf %308, %349 : vector<8x32xf32>
    %351 = vector.broadcast %275 : vector<1x32xf32> to vector<8x32xf32>
    %352 = arith.mulf %307, %351 : vector<8x32xf32>
    %353 = vector.broadcast %276 : vector<1x32xf32> to vector<8x32xf32>
    %354 = arith.mulf %308, %353 : vector<8x32xf32>
    %355 = arith.subf %352, %354 : vector<8x32xf32>
    %356 = vector.broadcast %277 : vector<1x32xf32> to vector<8x32xf32>
    %357 = arith.mulf %348, %356 : vector<8x32xf32>
    %358 = arith.addf %355, %357 : vector<8x32xf32>
    %359 = vector.broadcast %278 : vector<1x32xf32> to vector<8x32xf32>
    %360 = arith.mulf %350, %359 : vector<8x32xf32>
    %361 = arith.subf %358, %360 : vector<8x32xf32>
    %362 = vector.broadcast %276 : vector<1x32xf32> to vector<8x32xf32>
    %363 = arith.mulf %307, %362 : vector<8x32xf32>
    %364 = vector.broadcast %275 : vector<1x32xf32> to vector<8x32xf32>
    %365 = arith.mulf %308, %364 : vector<8x32xf32>
    %366 = arith.addf %363, %365 : vector<8x32xf32>
    %367 = vector.broadcast %278 : vector<1x32xf32> to vector<8x32xf32>
    %368 = arith.mulf %348, %367 : vector<8x32xf32>
    %369 = arith.addf %366, %368 : vector<8x32xf32>
    %370 = vector.broadcast %277 : vector<1x32xf32> to vector<8x32xf32>
    %371 = arith.mulf %350, %370 : vector<8x32xf32>
    %372 = arith.addf %369, %371 : vector<8x32xf32>
    %373 = tpu.concatenate %361, %372 in 0 : vector<8x32xf32>, vector<8x32xf32> -> vector<16x32xf32>
    %cst_83 = arith.constant dense<0.000000e+00> : vector<48x32xf32>
    %374 = tpu.matmul %7, %373, %cst_83 {dimension_numbers = #tpu.dot_dimension_numbers<[1], [0], [0], [1], [0, 0, 1, 1], [], []>} : vector<48x16xf32>, vector<16x32xf32>, vector<48x32xf32> -> vector<48x32xf32>
    %cst_84 = arith.constant dense<0.000000e+00> : vector<48xf32>
    %375 = vector.multi_reduction <add>, %374, %cst_84 [1] : vector<48x32xf32> to vector<48xf32>
    %376 = vector.shape_cast %375 : vector<48xf32> to vector<48x1xf32>
    %cst_85 = arith.constant 3.200000e+01 : f32
    %377 = vector.broadcast %cst_85 : f32 to vector<48x1xf32>
    %378 = arith.divf %376, %377 : vector<48x1xf32>
    %379 = vector.broadcast %378 : vector<48x1xf32> to vector<48x32xf32>
    %380 = arith.subf %374, %379 : vector<48x32xf32>
    %381 = arith.mulf %380, %380 : vector<48x32xf32>
    %cst_86 = arith.constant dense<0.000000e+00> : vector<48xf32>
    %382 = vector.multi_reduction <add>, %381, %cst_86 [1] : vector<48x32xf32> to vector<48xf32>
    %383 = vector.shape_cast %382 : vector<48xf32> to vector<48x1xf32>
    %cst_87 = arith.constant 3.200000e+01 : f32
    %384 = vector.broadcast %cst_87 : f32 to vector<48x1xf32>
    %385 = arith.divf %383, %384 : vector<48x1xf32>
    %386 = vector.broadcast %378 : vector<48x1xf32> to vector<48x32xf32>
    %387 = arith.subf %374, %386 : vector<48x32xf32>
    %cst_88 = arith.constant 9.99999974E-6 : f32
    %388 = vector.broadcast %cst_88 : f32 to vector<48x1xf32>
    %389 = arith.addf %385, %388 : vector<48x1xf32>
    %390 = math.rsqrt %389 : vector<48x1xf32>
    %391 = vector.broadcast %390 : vector<48x1xf32> to vector<48x32xf32>
    %392 = arith.mulf %387, %391 : vector<48x32xf32>
    %393 = vector.broadcast %273 : vector<1x32xf32> to vector<48x32xf32>
    %394 = arith.mulf %392, %393 : vector<48x32xf32>
    %395 = vector.broadcast %274 : vector<1x32xf32> to vector<48x32xf32>
    %396 = arith.addf %394, %395 : vector<48x32xf32>
    %397 = vector.extract_strided_slice %396 {offsets = [0, 0], sizes = [16, 32], strides = [1, 1]} : vector<48x32xf32> to vector<16x32xf32>
    %398 = vector.extract_strided_slice %396 {offsets = [16, 0], sizes = [16, 32], strides = [1, 1]} : vector<48x32xf32> to vector<16x32xf32>
    %399 = vector.broadcast %20 : vector<16x1xf32> to vector<16x32xf32>
    %400 = arith.mulf %398, %399 : vector<16x32xf32>
    %401 = vector.extract_strided_slice %396 {offsets = [32, 0], sizes = [16, 32], strides = [1, 1]} : vector<48x32xf32> to vector<16x32xf32>
    %402 = vector.broadcast %24 : vector<16x1xf32> to vector<16x32xf32>
    %403 = arith.mulf %401, %402 : vector<16x32xf32>
    %404 = vector.extract_strided_slice %283 {offsets = [0, 0], sizes = [32, 224], strides = [1, 1]} : vector<96x224xf32> to vector<32x224xf32>
    %cst_89 = arith.constant dense<0.000000e+00> : vector<16x224xf32>
    %405 = tpu.matmul %400, %404, %cst_89 {dimension_numbers = #tpu.dot_dimension_numbers<[1], [0], [0], [1], [0, 0, 1, 1], [], []>} : vector<16x32xf32>, vector<32x224xf32>, vector<16x224xf32> -> vector<16x224xf32>
    %406 = vector.extract_strided_slice %283 {offsets = [32, 0], sizes = [32, 224], strides = [1, 1]} : vector<96x224xf32> to vector<32x224xf32>
    %cst_90 = arith.constant dense<0.000000e+00> : vector<16x224xf32>
    %407 = tpu.matmul %397, %406, %cst_90 {dimension_numbers = #tpu.dot_dimension_numbers<[1], [0], [0], [1], [0, 0, 1, 1], [], []>} : vector<16x32xf32>, vector<32x224xf32>, vector<16x224xf32> -> vector<16x224xf32>
    %408 = arith.addf %405, %407 : vector<16x224xf32>
    %409 = vector.extract_strided_slice %283 {offsets = [64, 0], sizes = [32, 224], strides = [1, 1]} : vector<96x224xf32> to vector<32x224xf32>
    %cst_91 = arith.constant dense<0.000000e+00> : vector<16x224xf32>
    %410 = tpu.matmul %403, %409, %cst_91 {dimension_numbers = #tpu.dot_dimension_numbers<[1], [0], [0], [1], [0, 0, 1, 1], [], []>} : vector<16x32xf32>, vector<32x224xf32>, vector<16x224xf32> -> vector<16x224xf32>
    %411 = arith.addf %408, %410 : vector<16x224xf32>
    %412 = vector.extract_strided_slice %4 {offsets = [1, 0], sizes = [1, 224], strides = [1, 1]} : vector<2x224xf32> to vector<1x224xf32>
    %413 = vector.broadcast %412 : vector<1x224xf32> to vector<16x224xf32>
    %414 = arith.addf %411, %413 : vector<16x224xf32>
    %415 = vector.extract_strided_slice %414 {offsets = [0, 0], sizes = [16, 96], strides = [1, 1]} : vector<16x224xf32> to vector<16x96xf32>
    %416 = vector.extract_strided_slice %414 {offsets = [0, 128], sizes = [16, 96], strides = [1, 1]} : vector<16x224xf32> to vector<16x96xf32>
    %cst_92 = arith.constant 5.000000e-01 : f32
    %417 = vector.broadcast %cst_92 : f32 to vector<16x96xf32>
    %418 = arith.mulf %417, %415 : vector<16x96xf32>
    %cst_93 = arith.constant 0.707106769 : f32
    %419 = vector.broadcast %cst_93 : f32 to vector<16x96xf32>
    %420 = arith.mulf %415, %419 : vector<16x96xf32>
    %cst_94 = arith.constant 0.000000e+00 : f32
    %421 = vector.broadcast %cst_94 : f32 to vector<16x96xf32>
    %422 = arith.cmpf oge, %420, %421 : vector<16x96xf32>
    %cst_95 = arith.constant 1.000000e+00 : f32
    %cst_96 = arith.constant -1.000000e+00 : f32
    %423 = vector.broadcast %cst_95 : f32 to vector<16x96xf32>
    %424 = vector.broadcast %cst_96 : f32 to vector<16x96xf32>
    %425 = arith.select %422, %423, %424 : vector<16x96xi1>, vector<16x96xf32>
    %426 = math.absf %420 : vector<16x96xf32>
    %cst_97 = arith.constant 0.327591091 : f32
    %427 = vector.broadcast %cst_97 : f32 to vector<16x96xf32>
    %428 = arith.mulf %427, %426 : vector<16x96xf32>
    %cst_98 = arith.constant 1.000000e+00 : f32
    %429 = vector.broadcast %cst_98 : f32 to vector<16x96xf32>
    %430 = arith.addf %429, %428 : vector<16x96xf32>
    %cst_99 = arith.constant 1.000000e+00 : f32
    %431 = vector.broadcast %cst_99 : f32 to vector<16x96xf32>
    %432 = arith.divf %431, %430 : vector<16x96xf32>
    %cst_100 = arith.constant 1.06140542 : f32
    %433 = vector.broadcast %cst_100 : f32 to vector<16x96xf32>
    %434 = arith.mulf %432, %433 : vector<16x96xf32>
    %cst_101 = arith.constant -1.45315206 : f32
    %435 = vector.broadcast %cst_101 : f32 to vector<16x96xf32>
    %436 = arith.addf %435, %434 : vector<16x96xf32>
    %437 = arith.mulf %432, %436 : vector<16x96xf32>
    %cst_102 = arith.constant 1.42141378 : f32
    %438 = vector.broadcast %cst_102 : f32 to vector<16x96xf32>
    %439 = arith.addf %438, %437 : vector<16x96xf32>
    %440 = arith.mulf %432, %439 : vector<16x96xf32>
    %cst_103 = arith.constant -0.284496725 : f32
    %441 = vector.broadcast %cst_103 : f32 to vector<16x96xf32>
    %442 = arith.addf %441, %440 : vector<16x96xf32>
    %443 = arith.mulf %432, %442 : vector<16x96xf32>
    %cst_104 = arith.constant 0.254829586 : f32
    %444 = vector.broadcast %cst_104 : f32 to vector<16x96xf32>
    %445 = arith.addf %444, %443 : vector<16x96xf32>
    %446 = arith.mulf %432, %445 : vector<16x96xf32>
    %cst_105 = arith.constant 0.000000e+00 : f32
    %447 = vector.broadcast %cst_105 : f32 to vector<16x96xf32>
    %448 = arith.subf %447, %426 : vector<16x96xf32>
    %449 = arith.mulf %448, %426 : vector<16x96xf32>
    %450 = math.exp %449 : vector<16x96xf32>
    %451 = arith.mulf %446, %450 : vector<16x96xf32>
    %cst_106 = arith.constant 1.000000e+00 : f32
    %452 = vector.broadcast %cst_106 : f32 to vector<16x96xf32>
    %453 = arith.subf %452, %451 : vector<16x96xf32>
    %454 = arith.mulf %425, %453 : vector<16x96xf32>
    %cst_107 = arith.constant 1.000000e+00 : f32
    %455 = vector.broadcast %cst_107 : f32 to vector<16x96xf32>
    %456 = arith.addf %455, %454 : vector<16x96xf32>
    %457 = arith.mulf %418, %456 : vector<16x96xf32>
    %458 = arith.mulf %416, %457 : vector<16x96xf32>
    %cst_108 = arith.constant 5.000000e-01 : f32
    %459 = vector.broadcast %cst_108 : f32 to vector<16x96xf32>
    %460 = arith.mulf %459, %416 : vector<16x96xf32>
    %cst_109 = arith.constant 0.707106769 : f32
    %461 = vector.broadcast %cst_109 : f32 to vector<16x96xf32>
    %462 = arith.mulf %416, %461 : vector<16x96xf32>
    %cst_110 = arith.constant 0.000000e+00 : f32
    %463 = vector.broadcast %cst_110 : f32 to vector<16x96xf32>
    %464 = arith.cmpf oge, %462, %463 : vector<16x96xf32>
    %cst_111 = arith.constant 1.000000e+00 : f32
    %cst_112 = arith.constant -1.000000e+00 : f32
    %465 = vector.broadcast %cst_111 : f32 to vector<16x96xf32>
    %466 = vector.broadcast %cst_112 : f32 to vector<16x96xf32>
    %467 = arith.select %464, %465, %466 : vector<16x96xi1>, vector<16x96xf32>
    %468 = math.absf %462 : vector<16x96xf32>
    %cst_113 = arith.constant 0.327591091 : f32
    %469 = vector.broadcast %cst_113 : f32 to vector<16x96xf32>
    %470 = arith.mulf %469, %468 : vector<16x96xf32>
    %cst_114 = arith.constant 1.000000e+00 : f32
    %471 = vector.broadcast %cst_114 : f32 to vector<16x96xf32>
    %472 = arith.addf %471, %470 : vector<16x96xf32>
    %cst_115 = arith.constant 1.000000e+00 : f32
    %473 = vector.broadcast %cst_115 : f32 to vector<16x96xf32>
    %474 = arith.divf %473, %472 : vector<16x96xf32>
    %cst_116 = arith.constant 1.06140542 : f32
    %475 = vector.broadcast %cst_116 : f32 to vector<16x96xf32>
    %476 = arith.mulf %474, %475 : vector<16x96xf32>
    %cst_117 = arith.constant -1.45315206 : f32
    %477 = vector.broadcast %cst_117 : f32 to vector<16x96xf32>
    %478 = arith.addf %477, %476 : vector<16x96xf32>
    %479 = arith.mulf %474, %478 : vector<16x96xf32>
    %cst_118 = arith.constant 1.42141378 : f32
    %480 = vector.broadcast %cst_118 : f32 to vector<16x96xf32>
    %481 = arith.addf %480, %479 : vector<16x96xf32>
    %482 = arith.mulf %474, %481 : vector<16x96xf32>
    %cst_119 = arith.constant -0.284496725 : f32
    %483 = vector.broadcast %cst_119 : f32 to vector<16x96xf32>
    %484 = arith.addf %483, %482 : vector<16x96xf32>
    %485 = arith.mulf %474, %484 : vector<16x96xf32>
    %cst_120 = arith.constant 0.254829586 : f32
    %486 = vector.broadcast %cst_120 : f32 to vector<16x96xf32>
    %487 = arith.addf %486, %485 : vector<16x96xf32>
    %488 = arith.mulf %474, %487 : vector<16x96xf32>
    %cst_121 = arith.constant 0.000000e+00 : f32
    %489 = vector.broadcast %cst_121 : f32 to vector<16x96xf32>
    %490 = arith.subf %489, %468 : vector<16x96xf32>
    %491 = arith.mulf %490, %468 : vector<16x96xf32>
    %492 = math.exp %491 : vector<16x96xf32>
    %493 = arith.mulf %488, %492 : vector<16x96xf32>
    %cst_122 = arith.constant 1.000000e+00 : f32
    %494 = vector.broadcast %cst_122 : f32 to vector<16x96xf32>
    %495 = arith.subf %494, %493 : vector<16x96xf32>
    %496 = arith.mulf %467, %495 : vector<16x96xf32>
    %cst_123 = arith.constant 1.000000e+00 : f32
    %497 = vector.broadcast %cst_123 : f32 to vector<16x96xf32>
    %498 = arith.addf %497, %496 : vector<16x96xf32>
    %499 = arith.mulf %460, %498 : vector<16x96xf32>
    %500 = arith.mulf %415, %499 : vector<16x96xf32>
    %501 = arith.addf %458, %500 : vector<16x96xf32>
    %cst_124 = arith.constant dense<0.000000e+00> : vector<16x32xf32>
    %502 = tpu.matmul %501, %281, %cst_124 {dimension_numbers = #tpu.dot_dimension_numbers<[1], [0], [0], [1], [0, 0, 1, 1], [], []>} : vector<16x96xf32>, vector<96x32xf32>, vector<16x32xf32> -> vector<16x32xf32>
    %503 = arith.addf %270, %502 : vector<16x32xf32>
    %504 = vector.broadcast %279 : vector<1x32xf32> to vector<16x32xf32>
    %505 = arith.addf %503, %504 : vector<16x32xf32>
    %506 = vector.broadcast %16 : vector<16x1xf32> to vector<16x32xf32>
    %507 = arith.mulf %505, %506 : vector<16x32xf32>
    %cst_125 = arith.constant dense<0.000000e+00> : vector<32xf32>
    %508 = vector.multi_reduction <add>, %507, %cst_125 [0] : vector<16x32xf32> to vector<32xf32>
    %509 = vector.shape_cast %508 : vector<32xf32> to vector<1x32xf32>
    %cst_126 = arith.constant 0.0666666701 : f32
    %510 = vector.broadcast %cst_126 : f32 to vector<1x32xf32>
    %511 = arith.mulf %509, %510 : vector<1x32xf32>
    %cst_127 = arith.constant dense<0.000000e+00> : vector<1x32xf32>
    %512 = tpu.matmul %511, %9, %cst_127 {dimension_numbers = #tpu.dot_dimension_numbers<[1], [0], [0], [1], [0, 0, 1, 1], [], []>} : vector<1x32xf32>, vector<32x32xf32>, vector<1x32xf32> -> vector<1x32xf32>
    %513 = arith.addf %512, %11 : vector<1x32xf32>
    %514 = vector.extract_strided_slice %513 {offsets = [0, 0], sizes = [1, 5], strides = [1, 1]} : vector<1x32xf32> to vector<1x5xf32>
    %c0_128 = arith.constant 0 : index
    %c0_129 = arith.constant 0 : index
    %c0_130 = arith.constant 0 : index
    %515 = vector.load %arg8[%c0_128, %c0_129, %c0_130] : memref<1x1x5xf32, #tpu.memory_space<vmem>>, vector<1x1x5xf32>
    %516 = vector.shape_cast %515 : vector<1x1x5xf32> to vector<1x5xf32>
    %517 = vector.shape_cast %514 : vector<1x5xf32> to vector<1x1x5xf32>
    tpu.vector_store %arg8[%c0_128, %c0_129, %c0_130], %517 {strides = array<i32>} : memref<1x1x5xf32, #tpu.memory_space<vmem>>, vector<1x1x5xf32>,
    return
  }
  func.func @transform_0(%arg0: i32) -> (i32, i32, i32) {
    %c0_i32 = arith.constant 0 : i32
    %c0_i32_0 = arith.constant 0 : i32
    %c0_i32_1 = arith.constant 0 : i32
    return %arg0, %c0_i32, %c0_i32_0 : i32, i32, i32
  }
  func.func @transform_1(%arg0: i32) -> (i32, i32) {
    %c0_i32 = arith.constant 0 : i32
    %c0_i32_0 = arith.constant 0 : i32
    %c0_i32_1 = arith.constant 0 : i32
    return %c0_i32, %c0_i32_0 : i32, i32
  }
  func.func @transform_2(%arg0: i32) -> (i32, i32) {
    %c0_i32 = arith.constant 0 : i32
    %c0_i32_0 = arith.constant 0 : i32
    %c0_i32_1 = arith.constant 0 : i32
    return %c0_i32, %c0_i32_0 : i32, i32
  }
  func.func @transform_3(%arg0: i32) -> (i32, i32) {
    %c0_i32 = arith.constant 0 : i32
    %c0_i32_0 = arith.constant 0 : i32
    %c0_i32_1 = arith.constant 0 : i32
    return %c0_i32, %c0_i32_0 : i32, i32
  }
  func.func @transform_4(%arg0: i32) -> (i32, i32, i32) {
    %c0_i32 = arith.constant 0 : i32
    %c0_i32_0 = arith.constant 0 : i32
    %c0_i32_1 = arith.constant 0 : i32
    %c0_i32_2 = arith.constant 0 : i32
    return %c0_i32, %c0_i32_0, %c0_i32_1 : i32, i32, i32
  }
  func.func @transform_5(%arg0: i32) -> (i32, i32) {
    %c0_i32 = arith.constant 0 : i32
    %c0_i32_0 = arith.constant 0 : i32
    %c0_i32_1 = arith.constant 0 : i32
    return %c0_i32, %c0_i32_0 : i32, i32
  }
  func.func @transform_6(%arg0: i32) -> i32 {
    %c0_i32 = arith.constant 0 : i32
    %c0_i32_0 = arith.constant 0 : i32
    return %c0_i32 : i32
  }
  func.func @transform_7(%arg0: i32) -> (i32, i32, i32) {
    %c0_i32 = arith.constant 0 : i32
    %c0_i32_0 = arith.constant 0 : i32
    %c0_i32_1 = arith.constant 0 : i32
    return %arg0, %c0_i32, %c0_i32_0 : i32, i32, i32
  }
}

</mosaic_0001>

<llo_original>
// kernel: tslanet_forward.1
$region0: #{tslanet_forward.1}
  #allocation0 [shape = 'u32[]', space=smem, size = 0x4, offset = 0x4, fixed_abs, tag = 'smem constant byte address 0x4 - core index']
  #allocation1 [shape = 'u32[72,128]{1,0:T(1,128)}', space=vmem, size = 0x9000, scoped, tag = 'internal scratch']
  %s0 = inlined_call_operand.vmem [shape: f32[2,16,8], index: 0, kind: input, shape index: {}]
  %s1 = inlined_call_operand.vmem [shape: f32[64,16], index: 1, kind: input, shape index: {}]
  %s2 = inlined_call_operand.vmem [shape: f32[20,32], index: 2, kind: input, shape index: {}]
  %s3 = inlined_call_operand.vmem [shape: f32[2,224], index: 3, kind: input, shape index: {}]
  %s4 = inlined_call_operand.vmem [shape: f32[2,96,224], index: 4, kind: input, shape index: {}]
  %s5 = inlined_call_operand.vmem [shape: f32[232,32], index: 5, kind: input, shape index: {}]
  %s6 = inlined_call_operand.vmem [shape: f32[2], index: 6, kind: input, shape index: {}]
  %s7 = inlined_call_operand.hbm [shape: f32[2,1,5], index: 7, kind: output, shape index: {}]
  %s8 = sld [smem:[#allocation0]]
  $region65: #{tslanet_forward.1} parent=0
    _
  %s10 = ssub.s32 1, %s8
  %s11 = scalar_select 0, %s10, %s8
  $region1: #{tslanet_forward.1} parent=0
    #allocation2 [shape = 'u8[512]{0}', space=smem, size = 0x200, scoped, tag = 'input window, operand 6, single buffered']
    #allocation3 [shape = 's32[2]{0}', space=sflag, size = 0x8, scoped, tag = 'scoped memory for tslanet_forward.1']
    #allocation4 [shape = 's32[2]{0}', space=sflag, size = 0x8, scoped, tag = 'scoped memory for tslanet_forward.1']
    #allocation5 [shape = 'u8[1024]{0}', space=vmem, size = 0x400, scoped, tag = 'output window, operand 0']
    %12 = vsyncpa [#allocation4], 0
    %13 = vsyncpa [#allocation3], 0
    %s14 = scalar_lea.sflag [#allocation3], 1
    %15 = vsyncpa %s14, 0
    loop: start=0, step=1, limit=4
    $region2: #{tslanet_forward.1} parent=1 // loop_pre_header
      _
    $region3: #{tslanet_forward.1} parent=1 // loop_header
      %s17 = sphi 0, %s21
      %p18 = scmp.ge.s32.totalorder %s17, 4
      %s27 = sphi 0, %s29
      %s30 = sphi 0, %s27
      %s31 = sphi 0, %s30
      %s47 = sphi 0, %s31
      %s51 = sphi 0, %s51
      %s53 = sphi 0, %s51
      %s54 = sphi 0, %s53
      %s68 = sphi 0, %s54
      %s72 = sphi 0, %s72
      %s74 = sphi 0, %s72
      %s75 = sphi 0, %s74
      %s89 = sphi 0, %s75
      %s93 = sphi 0, %s93
      %s95 = sphi 0, %s93
      %s96 = sphi 0, %s95
      %s110 = sphi 0, %s96
      %s114 = sphi 0, %s114
      %s116 = sphi 0, %s114
      %s117 = sphi 0, %s116
      %s131 = sphi 0, %s117
      %s135 = sphi 0, %s135
      %s137 = sphi 0, %s135
      %s138 = sphi 0, %s137
      %s152 = sphi 0, %s138
      %s156 = sphi 0, %s156
      %s158 = sphi 0, %s156
      %s159 = sphi 0, %s158
      %s173 = sphi 0, %s159
      %s179 = sphi 0, %s181
      %s182 = sphi 0, %s179
      %s183 = sphi 0, %s182
      %s199 = sphi 0, %s183
    $region4: #{tslanet_forward.1} parent=1 // loop_header_branch
      %20 = sbr.rel (%p18) target = $region8
    $region5: #{tslanet_forward.1} parent=1 // loop_body
      %s22 = ssub.s32 %s17, 1
      %s23 = ssub.s32 %s17, 2
      %s24 = sadd.s32 %s17, 1
      %s25 = ssub.s32 %s17, %s24
      %p26 = scmp.eq.s32.totalorder %s25, 0
      %s28 = sadd.s32 %s27, 1
      %s29 = scalar_select %p26, %s27, %s28
      %p32 = pneg %p26
      %p33 = scmp.eq.s32.totalorder %s17, 1
      %p34 = por %p32, %p33
      %p35 = scmp.ne.s32.totalorder %s27, %s30
      %p36 = scmp.eq.s32.totalorder %s17, 0
      %p37 = por %p35, %p36
      %p38 = scmp.ne.s32.totalorder %s27, %s30
      %p39 = scmp.eq.s32.totalorder %s22, 1
      %p40 = por %p38, %p39
      %p41 = scmp.ne.s32.totalorder %s30, %s31
      %p42 = scmp.eq.s32.totalorder %s22, 0
      %p43 = por %p41, %p42
      %p44 = scmp.ne.s32.totalorder %s30, %s31
      %p45 = scmp.eq.s32.totalorder %s23, 1
      %p46 = por %p44, %p45
      %p48 = scmp.ne.s32.totalorder %s31, %s47
      %p49 = scmp.eq.s32.totalorder %s23, 0
      %p50 = por %p48, %p49
      %s52 = sadd.s32 %s51, 1
      %p55 = scmp.eq.s32.totalorder %s17, 1
      %p56 = scmp.ne.s32.totalorder %s51, %s53
      %p57 = scmp.eq.s32.totalorder %s17, 0
      %p58 = por %p56, %p57
      %p59 = scmp.ne.s32.totalorder %s51, %s53
      %p60 = scmp.eq.s32.totalorder %s22, 1
      %p61 = por %p59, %p60
      %p62 = scmp.ne.s32.totalorder %s53, %s54
      %p63 = scmp.eq.s32.totalorder %s22, 0
      %p64 = por %p62, %p63
      %p65 = scmp.ne.s32.totalorder %s53, %s54
      %p66 = scmp.eq.s32.totalorder %s23, 1
      %p67 = por %p65, %p66
      %p69 = scmp.ne.s32.totalorder %s54, %s68
      %p70 = scmp.eq.s32.totalorder %s23, 0
      %p71 = por %p69, %p70
      %s73 = sadd.s32 %s72, 1
      %p76 = scmp.eq.s32.totalorder %s17, 1
      %p77 = scmp.ne.s32.totalorder %s72, %s74
      %p78 = scmp.eq.s32.totalorder %s17, 0
      %p79 = por %p77, %p78
      %p80 = scmp.ne.s32.totalorder %s72, %s74
      %p81 = scmp.eq.s32.totalorder %s22, 1
      %p82 = por %p80, %p81
      %p83 = scmp.ne.s32.totalorder %s74, %s75
      %p84 = scmp.eq.s32.totalorder %s22, 0
      %p85 = por %p83, %p84
      %p86 = scmp.ne.s32.totalorder %s74, %s75
      %p87 = scmp.eq.s32.totalorder %s23, 1
      %p88 = por %p86, %p87
      %p90 = scmp.ne.s32.totalorder %s75, %s89
      %p91 = scmp.eq.s32.totalorder %s23, 0
      %p92 = por %p90, %p91
      %s94 = sadd.s32 %s93, 1
      %p97 = scmp.eq.s32.totalorder %s17, 1
      %p98 = scmp.ne.s32.totalorder %s93, %s95
      %p99 = scmp.eq.s32.totalorder %s17, 0
      %p100 = por %p98, %p99
      %p101 = scmp.ne.s32.totalorder %s93, %s95
      %p102 = scmp.eq.s32.totalorder %s22, 1
      %p103 = por %p101, %p102
      %p104 = scmp.ne.s32.totalorder %s95, %s96
      %p105 = scmp.eq.s32.totalorder %s22, 0
      %p106 = por %p104, %p105
      %p107 = scmp.ne.s32.totalorder %s95, %s96
      %p108 = scmp.eq.s32.totalorder %s23, 1
      %p109 = por %p107, %p108
      %p111 = scmp.ne.s32.totalorder %s96, %s110
      %p112 = scmp.eq.s32.totalorder %s23, 0
      %p113 = por %p111, %p112
      %s115 = sadd.s32 %s114, 1
      %p118 = scmp.eq.s32.totalorder %s17, 1
      %p119 = scmp.ne.s32.totalorder %s114, %s116
      %p120 = scmp.eq.s32.totalorder %s17, 0
      %p121 = por %p119, %p120
      %p122 = scmp.ne.s32.totalorder %s114, %s116
      %p123 = scmp.eq.s32.totalorder %s22, 1
      %p124 = por %p122, %p123
      %p125 = scmp.ne.s32.totalorder %s116, %s117
      %p126 = scmp.eq.s32.totalorder %s22, 0
      %p127 = por %p125, %p126
      %p128 = scmp.ne.s32.totalorder %s116, %s117
      %p129 = scmp.eq.s32.totalorder %s23, 1
      %p130 = por %p128, %p129
      %p132 = scmp.ne.s32.totalorder %s117, %s131
      %p133 = scmp.eq.s32.totalorder %s23, 0
      %p134 = por %p132, %p133
      %s136 = sadd.s32 %s135, 1
      %p139 = scmp.eq.s32.totalorder %s17, 1
      %p140 = scmp.ne.s32.totalorder %s135, %s137
      %p141 = scmp.eq.s32.totalorder %s17, 0
      %p142 = por %p140, %p141
      %p143 = scmp.ne.s32.totalorder %s135, %s137
      %p144 = scmp.eq.s32.totalorder %s22, 1
      %p145 = por %p143, %p144
      %p146 = scmp.ne.s32.totalorder %s137, %s138
      %p147 = scmp.eq.s32.totalorder %s22, 0
      %p148 = por %p146, %p147
      %p149 = scmp.ne.s32.totalorder %s137, %s138
      %p150 = scmp.eq.s32.totalorder %s23, 1
      %p151 = por %p149, %p150
      %p153 = scmp.ne.s32.totalorder %s138, %s152
      %p154 = scmp.eq.s32.totalorder %s23, 0
      %p155 = por %p153, %p154
      %s157 = sadd.s32 %s156, 1
      %p160 = scmp.eq.s32.totalorder %s17, 1
      %p161 = scmp.ne.s32.totalorder %s156, %s158
      %p162 = scmp.eq.s32.totalorder %s17, 0
      %p163 = por %p161, %p162
      %p164 = scmp.ne.s32.totalorder %s156, %s158
      %p165 = scmp.eq.s32.totalorder %s22, 1
      %p166 = por %p164, %p165
      %p167 = scmp.ne.s32.totalorder %s158, %s159
      %p168 = scmp.eq.s32.totalorder %s22, 0
      %p169 = por %p167, %p168
      %p170 = scmp.ne.s32.totalorder %s158, %s159
      %p171 = scmp.eq.s32.totalorder %s23, 1
      %p172 = por %p170, %p171
      %p174 = scmp.ne.s32.totalorder %s159, %s173
      %p175 = scmp.eq.s32.totalorder %s23, 0
      %p176 = por %p174, %p175
      %s177 = ssub.s32 %s17, %s24
      %p178 = scmp.eq.s32.totalorder %s177, 0
      %s180 = sadd.s32 %s179, 1
      %s181 = scalar_select %p178, %s179, %s180
      %p184 = pneg %p178
      %p185 = scmp.eq.s32.totalorder %s17, 1
      %p186 = por %p184, %p185
      %p187 = scmp.ne.s32.totalorder %s179, %s182
      %p188 = scmp.eq.s32.totalorder %s17, 0
      %p189 = por %p187, %p188
      %p190 = scmp.ne.s32.totalorder %s179, %s182
      %p191 = scmp.eq.s32.totalorder %s22, 1
      %p192 = por %p190, %p191
      %p193 = scmp.ne.s32.totalorder %s182, %s183
      %p194 = scmp.eq.s32.totalorder %s22, 0
      %p195 = por %p193, %p194
      %p196 = scmp.ne.s32.totalorder %s182, %s183
      %p197 = scmp.eq.s32.totalorder %s23, 1
      %p198 = por %p196, %p197
      %p200 = scmp.ne.s32.totalorder %s183, %s199
      %p201 = scmp.eq.s32.totalorder %s23, 0
      %p202 = por %p200, %p201
      %p203 = scmp.le.s32.totalorder 1, %s17
      %p204 = scmp.lt.s32.totalorder %s17, 3
      %p205 = pnand %p203, %p204
      %p206 = pneg %p205
      // Predicated region
      $region9: #{tslanet_forward.1} parent=5 // pred_check
        _
      $region10: #{tslanet_forward.1} parent=5 // pred_check_branch
        %208 = sbr.rel (%p205) target = $region12
      $region11: #{tslanet_forward.1} parent=5 // pred_region
        %s209 = ssub.s32 %s17, 1
        // Predicated region
        $region13: #{tslanet_forward.1} parent=11 // pred_check
          %p210 = pneg %p64
        $region14: #{tslanet_forward.1} parent=11 // pred_check_branch
          %212 = sbr.rel (%p210) target = $region16
        $region15: #{tslanet_forward.1} parent=11 // pred_region
          _
        $region16: #{tslanet_forward.1} parent=11 // pred_fallthru
          _
        // Predicated region
        $region17: #{tslanet_forward.1} parent=11 // pred_check
          %p213 = pneg %p85
        $region18: #{tslanet_forward.1} parent=11 // pred_check_branch
          %215 = sbr.rel (%p213) target = $region20
        $region19: #{tslanet_forward.1} parent=11 // pred_region
          _
        $region20: #{tslanet_forward.1} parent=11 // pred_fallthru
          _
        // Predicated region
        $region21: #{tslanet_forward.1} parent=11 // pred_check
          %p216 = pneg %p106
        $region22: #{tslanet_forward.1} parent=11 // pred_check_branch
          %218 = sbr.rel (%p216) target = $region24
        $region23: #{tslanet_forward.1} parent=11 // pred_region
          _
        $region24: #{tslanet_forward.1} parent=11 // pred_fallthru
          _
        // Predicated region
        $region25: #{tslanet_forward.1} parent=11 // pred_check
          %p219 = pneg %p127
        $region26: #{tslanet_forward.1} parent=11 // pred_check_branch
          %221 = sbr.rel (%p219) target = $region28
        $region27: #{tslanet_forward.1} parent=11 // pred_region
          _
        $region28: #{tslanet_forward.1} parent=11 // pred_fallthru
          _
        // Predicated region
        $region29: #{tslanet_forward.1} parent=11 // pred_check
          %p222 = pneg %p148
        $region30: #{tslanet_forward.1} parent=11 // pred_check_branch
          %224 = sbr.rel (%p222) target = $region32
        $region31: #{tslanet_forward.1} parent=11 // pred_region
          _
        $region32: #{tslanet_forward.1} parent=11 // pred_fallthru
          _
        // Predicated region
        $region33: #{tslanet_forward.1} parent=11 // pred_check
          %p225 = pneg %p169
        $region34: #{tslanet_forward.1} parent=11 // pred_check_branch
          %227 = sbr.rel (%p225) target = $region36
        $region35: #{tslanet_forward.1} parent=11 // pred_region
          %229 = vsyncadd [#allocation4], 0
          %s231 = sshll.u32 %s6, 4
          %s232 = int_to_ptr.vmem [resolvable:$true] %s231
          %234 = dma.vmem_to_smem %s232, 16, [#allocation2], [#allocation4]
        $region36: #{tslanet_forward.1} parent=11 // pred_fallthru
          _
      $region12: #{tslanet_forward.1} parent=5 // pred_fallthru
        _
      %p235 = scmp.lt.s32.totalorder %s17, 2
      // Predicated region
      $region37: #{tslanet_forward.1} parent=5 // pred_check
        %p236 = pneg %p235
      $region38: #{tslanet_forward.1} parent=5 // pred_check_branch
        %238 = sbr.rel (%p236) target = $region40
      $region39: #{tslanet_forward.1} parent=5 // pred_region
        // Predicated region
        $region41: #{tslanet_forward.1} parent=39 // pred_check
          %p239 = pneg %p37
        $region42: #{tslanet_forward.1} parent=39 // pred_check_branch
          %241 = sbr.rel (%p239) target = $region44
        $region43: #{tslanet_forward.1} parent=39 // pred_region
          %p242 = scmp.lt.s32.totalorder %s17, 1
          %s243 = scalar_select %p242, %s17, 1
          %s244 = smul.addr %s243, 2
          %s245 = smul.addr %s244, 8
          %s246 = scalar_lea.vmem %s0, %s245
        $region44: #{tslanet_forward.1} parent=39 // pred_fallthru
          _
      $region40: #{tslanet_forward.1} parent=5 // pred_fallthru
        _
      %p247 = scmp.le.s32.totalorder 1, %s17
      %p248 = scmp.lt.s32.totalorder %s17, 3
      %p249 = pnand %p247, %p248
      %p250 = pneg %p249
      // Predicated region
      $region45: #{tslanet_forward.1} parent=5 // pred_check
        _
      $region46: #{tslanet_forward.1} parent=5 // pred_check_branch
        %252 = sbr.rel (%p249) target = $region48
      $region47: #{tslanet_forward.1} parent=5 // pred_region
        %s253 = ssub.s32 %s17, 1
        // Predicated region
        $region49: #{tslanet_forward.1} parent=47 // pred_check
          %p254 = pneg %p169
        $region50: #{tslanet_forward.1} parent=47 // pred_check_branch
          %256 = sbr.rel (%p254) target = $region52
        $region51: #{tslanet_forward.1} parent=47 // pred_region
          %258 = dma.done [#allocation4], 16
        $region52: #{tslanet_forward.1} parent=47 // pred_fallthru
          _
        %259 = sfence
        %p260 = scmp.lt.s32.totalorder %s22, 1
        %s261 = scalar_select %p260, %s22, 1
        %s262 = smul.addr %s261, 2
        %s263 = smul.addr %s262, 8
        %s264 = scalar_lea.vmem %s0, %s263
        %p265 = pneg %p43
        %p266 = pneg %p40
        %p267 = pneg %p64
        %p268 = pneg %p61
        %p269 = pneg %p85
        %p270 = pneg %p82
        %p271 = pneg %p106
        %p272 = pneg %p103
        %p273 = pneg %p127
        %p274 = pneg %p124
        %p275 = pneg %p148
        %p276 = pneg %p145
        %p277 = pneg %p169
        %p278 = pneg %p166
        %p279 = pneg %p195
        %p280 = pneg %p192
        %s281 = sand.u32 %s182, 1
        %s282 = scalar_lea.sflag [#allocation3], %s281
        %s283 = sand.u32 %s182, 1
        %s284 = scalar_lea.vmem [#allocation5], %s283
        %p285 = scmp.lt.s32.totalorder %s22, 1
        %s286 = scalar_select %p285, %s22, 1
        %s287 = smul.addr %s286, 2
        %s288 = smul.addr %s287, 8
        %s289 = scalar_lea.vmem %s0, %s288
        %v290 = vld [vmem:[%s289] sm:$0xff]
        %v291 = vld [vmem:[%s289 + $0x8] sm:$0xff]
        %v292 = vld [vmem:[%s1] sm:$0xff]
        %v293 = vld [vmem:[%s1 + $0x8] sm:$0xff]
        %v294 = vld [vmem:[%s1 + $0x10] sm:$0xff]
        %v295 = vld [vmem:[%s1 + $0x18] sm:$0xff]
        %v296 = vld [vmem:[%s1 + $0x20] sm:$0xff]
        %v297 = vld [vmem:[%s1 + $0x28] sm:$0xff]
        %v298 = vld [vmem:[%s1 + $0x30] sm:$0xff]
        %v299 = vld [vmem:[%s1 + $0x38] sm:$0xff]
        %v300 = vld [vmem:[%s2] sm:$0xff]
        %v301 = vld [vmem:[%s2 + $0x8] sm:$0xff]
        %v302 = vld [vmem:[%s2 + $0x10] sm:$0xf]
        %v303 = vld [vmem:[%s3] sm:$0xf]
        %v304 = vld [vmem:[%s5] sm:$0xff]
        %v305 = vld [vmem:[%s5 + $0x8] sm:$0xff]
        %v306 = vld [vmem:[%s5 + $0x10] sm:$0xff]
        %v307 = vld [vmem:[%s5 + $0x18] sm:$0xff]
        %v308 = vld [vmem:[%s5 + $0x20] sm:$0xff]
        %v309 = vld [vmem:[%s5 + $0x28] sm:$0xff]
        %v310 = vld [vmem:[%s5 + $0x30] sm:$0xff]
        %v311 = vld [vmem:[%s5 + $0x38] sm:$0xff]
        %v312 = vld [vmem:[%s5 + $0x40] sm:$0xff]
        %v313 = vld [vmem:[%s5 + $0x48] sm:$0xff]
        %v314 = vld [vmem:[%s5 + $0x50] sm:$0xff]
        %v315 = vld [vmem:[%s5 + $0x58] sm:$0xff]
        %v316 = vld [vmem:[%s5 + $0x60] sm:$0xff]
        %v317 = vld [vmem:[%s5 + $0x68] sm:$0xff]
        %v318 = vld [vmem:[%s5 + $0x70] sm:$0xff]
        %v319 = vld [vmem:[%s5 + $0x78] sm:$0xff]
        %v320 = vld [vmem:[%s5 + $0x80] sm:$0xff]
        %v321 = vld [vmem:[%s5 + $0x88] sm:$0xff]
        %v322 = vld [vmem:[%s5 + $0x90] sm:$0xff]
        %v323 = vld [vmem:[%s5 + $0x98] sm:$0xff]
        %v324 = vld [vmem:[%s5 + $0xa0] sm:$0xff]
        %v325 = vld [vmem:[%s5 + $0xa8] sm:$0xff]
        %v326 = vld [vmem:[%s5 + $0xb0] sm:$0xff]
        %v327 = vld [vmem:[%s5 + $0xb8] sm:$0xff]
        %v328 = vld [vmem:[%s5 + $0xc0] sm:$0xff]
        %v329 = vld [vmem:[%s5 + $0xc8] sm:$0xff]
        %v330 = vld [vmem:[%s5 + $0xd0] sm:$0xff]
        %v331 = vld [vmem:[%s5 + $0xd8] sm:$0xff]
        %v332 = vld [vmem:[%s5 + $0xe0] sm:$0xff]
        %v333 = vlaneseq
        %v334 = vshrl.u32 %v333, 7
        %v335 = vadd.s32 %v334, 8
        %vm336 = vcmp.lt.s32.totalorder %v334, 15
        %vm337 = vcmp.lt.s32.totalorder %v335, 15
        %v338 = vsel %vm336, 1, 0
        %v339 = vsel %vm337, 1, 0
        %v340 = vcvt.s32.f32 %v338
        %v341 = vcvt.s32.f32 %v339
        %vm342 = vcmp.gt.s32.totalorder %v334, 0
        %vm343 = vcmp.gt.s32.totalorder %v335, 0
        %v344 = vsel %vm342, 1, 0
        %v345 = vsel %vm343, 1, 0
        %v346 = vcvt.s32.f32 %v344
        %v347 = vcvt.s32.f32 %v345
        %vm348 = vcmp.ne.s32.totalorder %v334, 14
        %vm349 = vcmp.ne.s32.totalorder %v335, 14
        %v350 = vsel %vm348, 1, 0
        %v351 = vsel %vm349, 1, 0
        %v352 = vcvt.s32.f32 %v350
        %v353 = vcvt.s32.f32 %v351
        %v354 = vlaneseq
        %v355 = vand.u32 %v354, 127
        %vm356 = vcmp.eq.s32.totalorder %v334, %v355
        %v357 = vsel %vm356, 1, 0
        %v358 = vcvt.s32.f32 %v357
        %vm359 = vcmp.lt.s32.totalorder %v334, %v355
        %v360 = vsel %vm359, 1, 0
        %v361 = vcvt.s32.f32 %v360
        %v362 = vperm.slane %v300, 0
        %vm363 = vcmask 64512
        %v365 = vsel %vm363, %v290, 0
        %v368 = vsel %vm363, %v291, 0
        %370 = vmatpush.msra.mxu0 0.0
        %371 = vmatpush.msra.mxu0 0.0
        %372 = vmatpush.msra.mxu0 0.0
        %373 = vmatpush.msra.mxu0 0.0
        %374 = vmatpush.msra.mxu0 0.0
        %375 = vmatpush.msra.mxu0 0.0
        %376 = vmatpush.msra.mxu0 0.0
        %377 = vmatpush.msra.mxu0 0.0
        %378 = vmatpush.msra.mxu0 0.0
        %379 = vmatpush.msra.mxu0 0.0
        %380 = vmatpush.msra.mxu0 0.0
        %381 = vmatpush.msra.mxu0 0.0
        %382 = vmatpush.msra.mxu0 0.0
        %383 = vmatpush.msra.mxu0 0.0
        %384 = vmatpush.msra.mxu0 0.0
        %385 = vmatpush.msra.mxu0 %v304
        %386 = vmatmul.f32.gmra.mxu0 %v365
        %v387 = vpop.f32.mrf.mxu0
        %v388 = vadd.f32 %v362, %v387
        %389 = vmatmul.f32.gmra.mxu0 %v368
        %v390 = vpop.f32.mrf.mxu0
        %v391 = vadd.f32 %v362, %v390
        %392 = vdwg.mxu0
        %s393 = sld [smem:[#allocation2]]
        %v394 = vld [vmem:[%s4] sm:$0xff]
        %v395 = vld [vmem:[%s4 + $0x8] sm:$0xff]
        %v396 = vld [vmem:[%s4 + $0x10] sm:$0xff]
        %v397 = vld [vmem:[%s4 + $0x18] sm:$0xff]
        %v398 = vld [vmem:[%s4 + $0x20] sm:$0xff]
        %v399 = vld [vmem:[%s4 + $0x28] sm:$0xff]
        %v400 = vld [vmem:[%s4 + $0x30] sm:$0xff]
        %v401 = vld [vmem:[%s4 + $0x38] sm:$0xff]
        %v402 = vld [vmem:[%s4 + $0x40] sm:$0xff]
        %v403 = vld [vmem:[%s4 + $0x48] sm:$0xff]
        %v404 = vld [vmem:[%s4 + $0x50] sm:$0xff]
        %v405 = vld [vmem:[%s4 + $0x58] sm:$0xff]
        %v406 = vld [vmem:[%s4 + $0x60] sm:$0xff]
        %v407 = vld [vmem:[%s4 + $0x68] sm:$0xff]
        %v408 = vld [vmem:[%s4 + $0x70] sm:$0xff]
        %v409 = vld [vmem:[%s4 + $0x78] sm:$0xff]
        %v410 = vld [vmem:[%s4 + $0x80] sm:$0xff]
        %v411 = vld [vmem:[%s4 + $0x88] sm:$0xff]
        %v412 = vld [vmem:[%s4 + $0x90] sm:$0xff]
        %v413 = vld [vmem:[%s4 + $0x98] sm:$0xff]
        %v414 = vld [vmem:[%s4 + $0xa0] sm:$0xff]
        %v415 = vld [vmem:[%s4 + $0xa8] sm:$0xff]
        %v416 = vld [vmem:[%s4 + $0xb0] sm:$0xff]
        %v417 = vld [vmem:[%s4 + $0xb8] sm:$0xff]
        %vm418 = vcmask 261120
        %v419 = vsel %vm418, %v388, 0.0
        %420 = vadd.xlane.f32.xlu0 %v419
        %v421 = vpop.xlane.xlu0 %420
        %v422 = vsel %vm418, %v391, 0.0
        %423 = vadd.xlane.f32.xlu0 %v422
        %v424 = vpop.xlane.xlu0 %423
        %v425 = vrcp.pop 32.0
        %v426 = vmul.f32 32.0, %v425
        %v427 = vsub.f32 1.0, %v426
        %v428 = vmul.f32 %v425, %v427
        %v429 = vadd.f32 %v425, %v428
        %vm430 = vweird.f32 %v425
        %v431 = vsel %vm430, %v425, %v429
        %v432 = vmul.f32 %v421, %v431
        %v433 = vmul.f32 %v424, %v431
        %v434 = vsub.f32 %v388, %v432
        %v435 = vsub.f32 %v391, %v433
        %v436 = vmul.f32 %v434, %v434
        %v437 = vmul.f32 %v435, %v435
        %v438 = vsel %vm418, %v436, 0.0
        %439 = vadd.xlane.f32.xlu0 %v438
        %v440 = vpop.xlane.xlu0 %439
        %v441 = vsel %vm418, %v437, 0.0
        %442 = vadd.xlane.f32.xlu0 %v441
        %v443 = vpop.xlane.xlu0 %442
        %v444 = vmul.f32 %v440, %v431
        %v445 = vmul.f32 %v443, %v431
        %v446 = vadd.f32 %v444, 1e-05
        %v447 = vadd.f32 %v445, 1e-05
        %v448 = vrsqrt.pop %v446
        %v449 = vmul.f32 %v448, %v446
        %v450 = vmul.f32 %v449, %v448
        %v451 = vmul.f32 0.5, %v450
        %v452 = vsub.f32 1.5, %v451
        %v453 = vmul.f32 %v448, %v452
        %vm454 = vweird.f32 %v446
        %vm455 = vweird.f32 %v448
        %vm456 = vmor %vm454, %vm455
        %v457 = vsel %vm456, %v448, %v453
        %v458 = vrsqrt.pop %v447
        %v459 = vmul.f32 %v458, %v447
        %v460 = vmul.f32 %v459, %v458
        %v461 = vmul.f32 0.5, %v460
        %v462 = vsub.f32 1.5, %v461
        %v463 = vmul.f32 %v458, %v462
        %vm464 = vweird.f32 %v447
        %vm465 = vweird.f32 %v458
        %vm466 = vmor %vm464, %vm465
        %v467 = vsel %vm466, %v458, %v463
        %v468 = vmul.f32 %v434, %v457
        %v469 = vmul.f32 %v435, %v467
        %v470 = vperm.slane %v300, 2
        %v471 = vmul.f32 %v468, %v470
        %v472 = vmul.f32 %v469, %v470
        %v473 = vperm.slane %v300, 3
        %v474 = vadd.f32 %v471, %v473
        %v475 = vadd.f32 %v472, %v473
        %vm476 = vcmask 130048
        %v478 = vsel %vm476, %v292, 0
        %v481 = vsel %vm476, %v293, 0
        %483 = vmatpush.msra.mxu0 0.0
        %484 = vmatpush.msra.mxu0 0.0
        %485 = vmatpush.msra.mxu0 0.0
        %486 = vmatpush.msra.mxu0 0.0
        %487 = vmatpush.msra.mxu0 0.0
        %488 = vmatpush.msra.mxu0 0.0
        %489 = vmatpush.msra.mxu0 0.0
        %490 = vmatpush.msra.mxu0 0.0
        %491 = vmatpush.msra.mxu0 0.0
        %492 = vmatpush.msra.mxu0 0.0
        %493 = vmatpush.msra.mxu0 0.0
        %494 = vmatpush.msra.mxu0 0.0
        %495 = vmatpush.msra.mxu0 0.0
        %496 = vmatpush.msra.mxu0 0.0
        %497 = vmatpush.msra.mxu0 %v475
        %498 = vmatpush.msra.mxu0 %v474
        %499 = vmatmul.f32.gmra.mxu0 %v478
        %v500 = vpop.f32.mrf.mxu0
        %v501 = vadd.f32 0.0, %v500
        %502 = vmatmul.f32.gmra.mxu0 %v481
        %v503 = vpop.f32.mrf.mxu0
        %v504 = vadd.f32 0.0, %v503
        %505 = vdwg.mxu0
        %v506 = vmul.f32 %v501, %v501
        %v507 = vmul.f32 %v504, %v504
        %v508 = vadd.f32 %v506, %v507
        %v509 = vsel %vm418, %v508, 0.0
        %510 = vadd.xlane.f32.xlu0 %v509
        %v511 = vpop.xlane.xlu0 %510
        %v512 = vmul.f32 %v358, %v511
        %v513 = vsel %vm363, %v512, 0.0
        %v514 = vrot.slane %v513, 4
        %v515 = vadd.f32 %v513, %v514
        %v516 = vrot.slane %v515, 2
        %v517 = vadd.f32 %v515, %v516
        %v518 = vrot.slane %v517, 1
        %v519 = vadd.f32 %v517, %v518
        %vm520 = vcmp.lt.f32.partialorder %v511, %v519
        %v521 = vsel %vm520, 1, 0
        %v522 = vcvt.s32.f32 %v521
        %vm523 = vcmp.eq.f32.partialorder %v511, %v519
        %v524 = vsel %vm523, 1, 0
        %v525 = vcvt.s32.f32 %v524
        %v526 = vmul.f32 %v361, %v525
        %v527 = vadd.f32 %v522, %v526
        %v528 = vsel %vm363, %v527, 0.0
        %v529 = vrot.slane %v528, 4
        %v530 = vadd.f32 %v528, %v529
        %v531 = vrot.slane %v530, 2
        %v532 = vadd.f32 %v530, %v531
        %v533 = vrot.slane %v532, 1
        %v534 = vadd.f32 %v532, %v533
        %vm535 = vcmp.eq.f32.partialorder %v534, 3.0
        %v536 = vsel %vm535, 1, 0
        %v537 = vcvt.s32.f32 %v536
        %v538 = vmul.f32 %v519, %v537
        %v539 = vsel %vm363, %v538, 0.0
        %540 = vadd.xlane.f32.xlu0 %v539
        %v541 = vpop.xlane.xlu0 %540
        %v542 = vadd.f32 %v541, 1e-06
        %v543 = vrcp.pop %v542
        %v544 = vmul.f32 %v542, %v543
        %v545 = vsub.f32 1.0, %v544
        %v546 = vmul.f32 %v543, %v545
        %v547 = vadd.f32 %v543, %v546
        %vm548 = vweird.f32 %v542
        %vm549 = vweird.f32 %v543
        %vm550 = vmor %vm548, %vm549
        %v551 = vsel %vm550, %v543, %v547
        %v552 = vand.u32 2147483647, %v542
        %vm553 = vcmp.eq.f32.partialorder %v552, 8.507059e+37
        %v554 = vand.u32 %v542, 2147483648
        %v555 = vor.u32 1.1754944e-38, %v554
        %v556 = vsel %vm553, %v555, %v551
        %v557 = vmul.f32 %v511, %v556
        %v558 = vstv %s393
        %vm559 = vcmp.gt.f32.partialorder %v557, %v558
        %v560 = vsel %vm559, 1, 0
        %v561 = vcvt.s32.f32 %v560
        %v562 = vmul.f32 %v501, %v561
        %v563 = vmul.f32 %v504, %v561
        %v564 = vperm.slane %v300, 6
        %v565 = vmul.f32 %v501, %v564
        %v566 = vperm.slane %v300, 7
        %v567 = vmul.f32 %v504, %v566
        %v568 = vsub.f32 %v565, %v567
        %v569 = vperm.slane %v301, 0
        %v570 = vmul.f32 %v562, %v569
        %v571 = vadd.f32 %v568, %v570
        %v572 = vperm.slane %v301, 1
        %v573 = vmul.f32 %v563, %v572
        %v574 = vsub.f32 %v571, %v573
        %v575 = vmul.f32 %v501, %v566
        %v576 = vmul.f32 %v504, %v564
        %v577 = vadd.f32 %v575, %v576
        %v578 = vmul.f32 %v562, %v572
        %v579 = vadd.f32 %v577, %v578
        %v580 = vmul.f32 %v563, %v569
        %v581 = vadd.f32 %v579, %v580
        %v583 = vsel %vm476, %v294, 0
        %v586 = vsel %vm476, %v295, 0
        %v589 = vsel %vm476, %v296, 0
        %v592 = vsel %vm476, %v297, 0
        %v595 = vsel %vm476, %v298, 0
        %v598 = vsel %vm476, %v299, 0
        %600 = vmatpush.msra.mxu0 0.0
        %601 = vmatpush.msra.mxu0 0.0
        %602 = vmatpush.msra.mxu0 0.0
        %603 = vmatpush.msra.mxu0 0.0
        %604 = vmatpush.msra.mxu0 0.0
        %605 = vmatpush.msra.mxu0 0.0
        %606 = vmatpush.msra.mxu0 0.0
        %607 = vmatpush.msra.mxu0 0.0
        %608 = vmatpush.msra.mxu0 0.0
        %609 = vmatpush.msra.mxu0 0.0
        %610 = vmatpush.msra.mxu0 0.0
        %611 = vmatpush.msra.mxu0 0.0
        %612 = vmatpush.msra.mxu0 0.0
        %613 = vmatpush.msra.mxu0 0.0
        %614 = vmatpush.msra.mxu0 %v581
        %615 = vmatpush.msra.mxu0 %v574
        %616 = vmatmul.f32.gmra.mxu0 %v583
        %v617 = vpop.f32.mrf.mxu0
        %v618 = vadd.f32 0.0, %v617
        %619 = vmatmul.f32.gmra.mxu0 %v586
        %v620 = vpop.f32.mrf.mxu0
        %v621 = vadd.f32 0.0, %v620
        %622 = vmatmul.f32.gmra.mxu0 %v589
        %v623 = vpop.f32.mrf.mxu0
        %v624 = vadd.f32 0.0, %v623
        %625 = vmatmul.f32.gmra.mxu0 %v592
        %v626 = vpop.f32.mrf.mxu0
        %v627 = vadd.f32 0.0, %v626
        %628 = vmatmul.f32.gmra.mxu0 %v595
        %v629 = vpop.f32.mrf.mxu0
        %v630 = vadd.f32 0.0, %v629
        %631 = vmatmul.f32.gmra.mxu0 %v598
        %v632 = vpop.f32.mrf.mxu0
        %v633 = vadd.f32 0.0, %v632
        %634 = vdwg.mxu0
        %v635 = vsel %vm418, %v618, 0.0
        %636 = vadd.xlane.f32.xlu0 %v635
        %v637 = vpop.xlane.xlu0 %636
        %v638 = vsel %vm418, %v621, 0.0
        %639 = vadd.xlane.f32.xlu0 %v638
        %v640 = vpop.xlane.xlu0 %639
        %v641 = vsel %vm418, %v624, 0.0
        %642 = vadd.xlane.f32.xlu0 %v641
        %v643 = vpop.xlane.xlu0 %642
        %v644 = vsel %vm418, %v627, 0.0
        %645 = vadd.xlane.f32.xlu0 %v644
        %v646 = vpop.xlane.xlu0 %645
        %v647 = vsel %vm418, %v630, 0.0
        %648 = vadd.xlane.f32.xlu0 %v647
        %v649 = vpop.xlane.xlu0 %648
        %v650 = vsel %vm418, %v633, 0.0
        %651 = vadd.xlane.f32.xlu0 %v650
        %v652 = vpop.xlane.xlu0 %651
        %v653 = vmul.f32 %v637, %v431
        %v654 = vmul.f32 %v640, %v431
        %v655 = vmul.f32 %v643, %v431
        %v656 = vmul.f32 %v646, %v431
        %v657 = vmul.f32 %v649, %v431
        %v658 = vmul.f32 %v652, %v431
        %v659 = vsub.f32 %v618, %v653
        %v660 = vsub.f32 %v621, %v654
        %v661 = vsub.f32 %v624, %v655
        %v662 = vsub.f32 %v627, %v656
        %v663 = vsub.f32 %v630, %v657
        %v664 = vsub.f32 %v633, %v658
        %v665 = vmul.f32 %v659, %v659
        %v666 = vmul.f32 %v660, %v660
        %v667 = vmul.f32 %v661, %v661
        %v668 = vmul.f32 %v662, %v662
        %v669 = vmul.f32 %v663, %v663
        %v670 = vmul.f32 %v664, %v664
        %v671 = vsel %vm418, %v665, 0.0
        %672 = vadd.xlane.f32.xlu0 %v671
        %v673 = vpop.xlane.xlu0 %672
        %v674 = vsel %vm418, %v666, 0.0
        %675 = vadd.xlane.f32.xlu0 %v674
        %v676 = vpop.xlane.xlu0 %675
        %v677 = vsel %vm418, %v667, 0.0
        %678 = vadd.xlane.f32.xlu0 %v677
        %v679 = vpop.xlane.xlu0 %678
        %v680 = vsel %vm418, %v668, 0.0
        %681 = vadd.xlane.f32.xlu0 %v680
        %v682 = vpop.xlane.xlu0 %681
        %v683 = vsel %vm418, %v669, 0.0
        %684 = vadd.xlane.f32.xlu0 %v683
        %v685 = vpop.xlane.xlu0 %684
        %v686 = vsel %vm418, %v670, 0.0
        %687 = vadd.xlane.f32.xlu0 %v686
        %v688 = vpop.xlane.xlu0 %687
        %v689 = vmul.f32 %v673, %v431
        %v690 = vmul.f32 %v676, %v431
        %v691 = vmul.f32 %v679, %v431
        %v692 = vmul.f32 %v682, %v431
        %v693 = vmul.f32 %v685, %v431
        %v694 = vmul.f32 %v688, %v431
        %v695 = vadd.f32 %v689, 1e-05
        %v696 = vadd.f32 %v690, 1e-05
        %v697 = vadd.f32 %v691, 1e-05
        %v698 = vadd.f32 %v692, 1e-05
        %v699 = vadd.f32 %v693, 1e-05
        %v700 = vadd.f32 %v694, 1e-05
        %v701 = vrsqrt.pop %v695
        %v702 = vmul.f32 %v701, %v695
        %v703 = vmul.f32 %v702, %v701
        %v704 = vmul.f32 0.5, %v703
        %v705 = vsub.f32 1.5, %v704
        %v706 = vmul.f32 %v701, %v705
        %vm707 = vweird.f32 %v695
        %vm708 = vweird.f32 %v701
        %vm709 = vmor %vm707, %vm708
        %v710 = vsel %vm709, %v701, %v706
        %v711 = vrsqrt.pop %v696
        %v712 = vmul.f32 %v711, %v696
        %v713 = vmul.f32 %v712, %v711
        %v714 = vmul.f32 0.5, %v713
        %v715 = vsub.f32 1.5, %v714
        %v716 = vmul.f32 %v711, %v715
        %vm717 = vweird.f32 %v696
        %vm718 = vweird.f32 %v711
        %vm719 = vmor %vm717, %vm718
        %v720 = vsel %vm719, %v711, %v716
        %v721 = vrsqrt.pop %v697
        %v722 = vmul.f32 %v721, %v697
        %v723 = vmul.f32 %v722, %v721
        %v724 = vmul.f32 0.5, %v723
        %v725 = vsub.f32 1.5, %v724
        %v726 = vmul.f32 %v721, %v725
        %vm727 = vweird.f32 %v697
        %vm728 = vweird.f32 %v721
        %vm729 = vmor %vm727, %vm728
        %v730 = vsel %vm729, %v721, %v726
        %v731 = vrsqrt.pop %v698
        %v732 = vmul.f32 %v731, %v698
        %v733 = vmul.f32 %v732, %v731
        %v734 = vmul.f32 0.5, %v733
        %v735 = vsub.f32 1.5, %v734
        %v736 = vmul.f32 %v731, %v735
        %vm737 = vweird.f32 %v698
        %vm738 = vweird.f32 %v731
        %vm739 = vmor %vm737, %vm738
        %v740 = vsel %vm739, %v731, %v736
        %v741 = vrsqrt.pop %v699
        %v742 = vmul.f32 %v741, %v699
        %v743 = vmul.f32 %v742, %v741
        %v744 = vmul.f32 0.5, %v743
        %v745 = vsub.f32 1.5, %v744
        %v746 = vmul.f32 %v741, %v745
        %vm747 = vweird.f32 %v699
        %vm748 = vweird.f32 %v741
        %vm749 = vmor %vm747, %vm748
        %v750 = vsel %vm749, %v741, %v746
        %v751 = vrsqrt.pop %v700
        %v752 = vmul.f32 %v751, %v700
        %v753 = vmul.f32 %v752, %v751
        %v754 = vmul.f32 0.5, %v753
        %v755 = vsub.f32 1.5, %v754
        %v756 = vmul.f32 %v751, %v755
        %vm757 = vweird.f32 %v700
        %vm758 = vweird.f32 %v751
        %vm759 = vmor %vm757, %vm758
        %v760 = vsel %vm759, %v751, %v756
        %v761 = vmul.f32 %v659, %v710
        %v762 = vmul.f32 %v660, %v720
        %v763 = vmul.f32 %v661, %v730
        %v764 = vmul.f32 %v662, %v740
        %v765 = vmul.f32 %v663, %v750
        %v766 = vmul.f32 %v664, %v760
        %v767 = vperm.slane %v300, 4
        %v768 = vmul.f32 %v761, %v767
        %v769 = vmul.f32 %v762, %v767
        %v770 = vmul.f32 %v763, %v767
        %v771 = vmul.f32 %v764, %v767
        %v772 = vmul.f32 %v765, %v767
        %v773 = vmul.f32 %v766, %v767
        %v774 = vperm.slane %v300, 5
        %v775 = vadd.f32 %v768, %v774
        %v776 = vadd.f32 %v769, %v774
        %v777 = vadd.f32 %v770, %v774
        %v778 = vadd.f32 %v771, %v774
        %v779 = vadd.f32 %v772, %v774
        %v780 = vadd.f32 %v773, %v774
        %v781 = vmul.f32 %v777, %v346
        %v782 = vmul.f32 %v778, %v347
        %v783 = vmul.f32 %v779, %v352
        %v784 = vmul.f32 %v780, %v353
        %v786 = vsel %vm418, %v775, 0
        %v789 = vsel %vm418, %v776, 0
        %791 = vmatpush.msra.mxu0 0.0
        %792 = vmatpush.msra.mxu0 0.0
        %793 = vmatpush.msra.mxu0 0.0
        %794 = vmatpush.msra.mxu0 0.0
        %795 = vmatpush.msra.mxu0 0.0
        %796 = vmatpush.msra.mxu0 0.0
        %797 = vmatpush.msra.mxu0 0.0
        %798 = vmatpush.msra.mxu0 0.0
        %799 = vmatpush.msra.mxu0 0.0
        %800 = vmatpush.msra.mxu0 0.0
        %801 = vmatpush.msra.mxu0 0.0
        %802 = vmatpush.msra.mxu0 0.0
        %803 = vmatpush.msra.mxu0 %v408
        %804 = vmatpush.msra.mxu0 %v406
        %805 = vmatpush.msra.mxu0 %v404
        %806 = vmatpush.msra.mxu0 %v402
        %807 = vmatmul.f32.gmra.mxu0 %v786
        %v808 = vpop.f32.mrf.mxu0
        %v809 = vadd.f32 0.0, %v808
        %810 = vmatmul.f32.gmra.mxu0 %v789
        %v811 = vpop.f32.mrf.mxu0
        %v812 = vadd.f32 0.0, %v811
        %813 = vdwg.mxu0
        %814 = vmatpush.msra.mxu0 0.0
        %815 = vmatpush.msra.mxu0 0.0
        %816 = vmatpush.msra.mxu0 0.0
        %817 = vmatpush.msra.mxu0 0.0
        %818 = vmatpush.msra.mxu0 0.0
        %819 = vmatpush.msra.mxu0 0.0
        %820 = vmatpush.msra.mxu0 0.0
        %821 = vmatpush.msra.mxu0 0.0
        %822 = vmatpush.msra.mxu0 0.0
        %823 = vmatpush.msra.mxu0 0.0
        %824 = vmatpush.msra.mxu0 0.0
        %825 = vmatpush.msra.mxu0 0.0
        %826 = vmatpush.msra.mxu0 %v409
        %827 = vmatpush.msra.mxu0 %v407
        %828 = vmatpush.msra.mxu0 %v405
        %829 = vmatpush.msra.mxu0 %v403
        %830 = vmatmul.f32.gmra.mxu0 %v786
        %v831 = vpop.f32.mrf.mxu0
        %v832 = vadd.f32 0.0, %v831
        %833 = vmatmul.f32.gmra.mxu0 %v789
        %v834 = vpop.f32.mrf.mxu0
        %v835 = vadd.f32 0.0, %v834
        %836 = vdwg.mxu0
        %v838 = vsel %vm418, %v781, 0
        %v841 = vsel %vm418, %v782, 0
        %843 = vmatpush.msra.mxu0 0.0
        %844 = vmatpush.msra.mxu0 0.0
        %845 = vmatpush.msra.mxu0 0.0
        %846 = vmatpush.msra.mxu0 0.0
        %847 = vmatpush.msra.mxu0 0.0
        %848 = vmatpush.msra.mxu0 0.0
        %849 = vmatpush.msra.mxu0 0.0
        %850 = vmatpush.msra.mxu0 0.0
        %851 = vmatpush.msra.mxu0 0.0
        %852 = vmatpush.msra.mxu0 0.0
        %853 = vmatpush.msra.mxu0 0.0
        %854 = vmatpush.msra.mxu0 0.0
        %855 = vmatpush.msra.mxu0 %v400
        %856 = vmatpush.msra.mxu0 %v398
        %857 = vmatpush.msra.mxu0 %v396
        %858 = vmatpush.msra.mxu0 %v394
        %859 = vmatmul.f32.gmra.mxu0 %v838
        %v860 = vpop.f32.mrf.mxu0
        %v861 = vadd.f32 %v809, %v860
        %862 = vmatmul.f32.gmra.mxu0 %v841
        %v863 = vpop.f32.mrf.mxu0
        %v864 = vadd.f32 %v812, %v863
        %865 = vdwg.mxu0
        %866 = vmatpush.msra.mxu0 0.0
        %867 = vmatpush.msra.mxu0 0.0
        %868 = vmatpush.msra.mxu0 0.0
        %869 = vmatpush.msra.mxu0 0.0
        %870 = vmatpush.msra.mxu0 0.0
        %871 = vmatpush.msra.mxu0 0.0
        %872 = vmatpush.msra.mxu0 0.0
        %873 = vmatpush.msra.mxu0 0.0
        %874 = vmatpush.msra.mxu0 0.0
        %875 = vmatpush.msra.mxu0 0.0
        %876 = vmatpush.msra.mxu0 0.0
        %877 = vmatpush.msra.mxu0 0.0
        %878 = vmatpush.msra.mxu0 %v401
        %879 = vmatpush.msra.mxu0 %v399
        %880 = vmatpush.msra.mxu0 %v397
        %881 = vmatpush.msra.mxu0 %v395
        %882 = vmatmul.f32.gmra.mxu0 %v838
        %v883 = vpop.f32.mrf.mxu0
        %v884 = vadd.f32 %v832, %v883
        %885 = vmatmul.f32.gmra.mxu0 %v841
        %v886 = vpop.f32.mrf.mxu0
        %v887 = vadd.f32 %v835, %v886
        %888 = vdwg.mxu0
        %v890 = vsel %vm418, %v783, 0
        %v893 = vsel %vm418, %v784, 0
        %895 = vmatpush.msra.mxu0 0.0
        %896 = vmatpush.msra.mxu0 0.0
        %897 = vmatpush.msra.mxu0 0.0
        %898 = vmatpush.msra.mxu0 0.0
        %899 = vmatpush.msra.mxu0 0.0
        %900 = vmatpush.msra.mxu0 0.0
        %901 = vmatpush.msra.mxu0 0.0
        %902 = vmatpush.msra.mxu0 0.0
        %903 = vmatpush.msra.mxu0 0.0
        %904 = vmatpush.msra.mxu0 0.0
        %905 = vmatpush.msra.mxu0 0.0
        %906 = vmatpush.msra.mxu0 0.0
        %907 = vmatpush.msra.mxu0 %v416
        %908 = vmatpush.msra.mxu0 %v414
        %909 = vmatpush.msra.mxu0 %v412
        %910 = vmatpush.msra.mxu0 %v410
        %911 = vmatmul.f32.gmra.mxu0 %v890
        %v912 = vpop.f32.mrf.mxu0
        %v913 = vadd.f32 0.0, %v912
        %914 = vmatmul.f32.gmra.mxu0 %v893
        %v915 = vpop.f32.mrf.mxu0
        %v916 = vadd.f32 0.0, %v915
        %917 = vdwg.mxu0
        %918 = vmatpush.msra.mxu0 0.0
        %919 = vmatpush.msra.mxu0 0.0
        %920 = vmatpush.msra.mxu0 0.0
        %921 = vmatpush.msra.mxu0 0.0
        %922 = vmatpush.msra.mxu0 0.0
        %923 = vmatpush.msra.mxu0 0.0
        %924 = vmatpush.msra.mxu0 0.0
        %925 = vmatpush.msra.mxu0 0.0
        %926 = vmatpush.msra.mxu0 0.0
        %927 = vmatpush.msra.mxu0 0.0
        %928 = vmatpush.msra.mxu0 0.0
        %929 = vmatpush.msra.mxu0 0.0
        %930 = vmatpush.msra.mxu0 %v417
        %931 = vmatpush.msra.mxu0 %v415
        %932 = vmatpush.msra.mxu0 %v413
        %933 = vmatpush.msra.mxu0 %v411
        %934 = vmatmul.f32.gmra.mxu0 %v890
        %v935 = vpop.f32.mrf.mxu0
        %v936 = vadd.f32 0.0, %v935
        %937 = vmatmul.f32.gmra.mxu0 %v893
        %v938 = vpop.f32.mrf.mxu0
        %v939 = vadd.f32 0.0, %v938
        %940 = vdwg.mxu0
        %v941 = vadd.f32 %v861, %v913
        %v942 = vadd.f32 %v884, %v936
        %v943 = vadd.f32 %v864, %v916
        %v944 = vadd.f32 %v887, %v939
        %v946 = vperm.slane %v303, 0
        %v947 = vperm.slane %v303, 2
        %v950 = vperm.slane %v946, 0
        %v951 = vperm.slane %v947, 0
        %v952 = vadd.f32 %v941, %v950
        %v953 = vadd.f32 %v942, %v951
        %v954 = vadd.f32 %v943, %v950
        %v955 = vadd.f32 %v944, %v951
        %v956 = vmul.f32 %v952, 0.5
        %v957 = vmul.f32 %v954, 0.5
        %v958 = vmul.f32 %v952, 0.70710677
        %v959 = vmul.f32 %v954, 0.70710677
        %vm960 = vcmp.ge.f32.partialorder %v958, 0.0
        %vm961 = vcmp.ge.f32.partialorder %v959, 0.0
        %v962 = vsel %vm960, 1.0, -1.0
        %v963 = vsel %vm961, 1.0, -1.0
        %v964 = vand.u32 2147483647, %v958
        %v965 = vand.u32 2147483647, %v959
        %v966 = vmul.f32 %v964, 0.3275911
        %v967 = vmul.f32 %v965, 0.3275911
        %v968 = vadd.f32 %v966, 1.0
        %v969 = vadd.f32 %v967, 1.0
        %v970 = vrcp.pop %v968
        %v971 = vmul.f32 %v968, %v970
        %v972 = vsub.f32 1.0, %v971
        %v973 = vmul.f32 %v970, %v972
        %v974 = vadd.f32 %v970, %v973
        %vm975 = vweird.f32 %v968
        %vm976 = vweird.f32 %v970
        %vm977 = vmor %vm975, %vm976
        %v978 = vsel %vm977, %v970, %v974
        %v979 = vand.u32 2147483647, %v968
        %vm980 = vcmp.eq.f32.partialorder %v979, 8.507059e+37
        %v981 = vand.u32 %v968, 2147483648
        %v982 = vor.u32 1.1754944e-38, %v981
        %v983 = vsel %vm980, %v982, %v978
        %v984 = vmul.f32 1.0, %v983
        %v985 = vrcp.pop %v969
        %v986 = vmul.f32 %v969, %v985
        %v987 = vsub.f32 1.0, %v986
        %v988 = vmul.f32 %v985, %v987
        %v989 = vadd.f32 %v985, %v988
        %vm990 = vweird.f32 %v969
        %vm991 = vweird.f32 %v985
        %vm992 = vmor %vm990, %vm991
        %v993 = vsel %vm992, %v985, %v989
        %v994 = vand.u32 2147483647, %v969
        %vm995 = vcmp.eq.f32.partialorder %v994, 8.507059e+37
        %v996 = vand.u32 %v969, 2147483648
        %v997 = vor.u32 1.1754944e-38, %v996
        %v998 = vsel %vm995, %v997, %v993
        %v999 = vmul.f32 1.0, %v998
        %v1000 = vmul.f32 %v984, 1.0614054
        %v1001 = vmul.f32 %v999, 1.0614054
        %v1002 = vadd.f32 %v1000, -1.4531521
        %v1003 = vadd.f32 %v1001, -1.4531521
        %v1004 = vmul.f32 %v984, %v1002
        %v1005 = vmul.f32 %v999, %v1003
        %v1006 = vadd.f32 %v1004, 1.4214138
        %v1007 = vadd.f32 %v1005, 1.4214138
        %v1008 = vmul.f32 %v984, %v1006
        %v1009 = vmul.f32 %v999, %v1007
        %v1010 = vadd.f32 %v1008, -0.28449672
        %v1011 = vadd.f32 %v1009, -0.28449672
        %v1012 = vmul.f32 %v984, %v1010
        %v1013 = vmul.f32 %v999, %v1011
        %v1014 = vadd.f32 %v1012, 0.2548296
        %v1015 = vadd.f32 %v1013, 0.2548296
        %v1016 = vmul.f32 %v984, %v1014
        %v1017 = vmul.f32 %v999, %v1015
        %v1018 = vsub.f32 0.0, %v964
        %v1019 = vsub.f32 0.0, %v965
        %v1020 = vmul.f32 %v1018, %v964
        %v1021 = vmul.f32 %v1019, %v965
        %v1022 = vmul.f32 %v1020, 1.442695
        %v1023 = vpow.pop %v1022
        %v1024 = vmul.f32 %v1021, 1.442695
        %v1025 = vpow.pop %v1024
        %v1026 = vmul.f32 %v1016, %v1023
        %v1027 = vmul.f32 %v1017, %v1025
        %v1028 = vsub.f32 1.0, %v1026
        %v1029 = vsub.f32 1.0, %v1027
        %v1030 = vmul.f32 %v962, %v1028
        %v1031 = vmul.f32 %v963, %v1029
        %v1032 = vadd.f32 %v1030, 1.0
        %v1033 = vadd.f32 %v1031, 1.0
        %v1034 = vmul.f32 %v956, %v1032
        %v1035 = vmul.f32 %v957, %v1033
        %v1036 = vmul.f32 %v953, %v1034
        %v1037 = vmul.f32 %v955, %v1035
        %v1038 = vmul.f32 %v953, 0.5
        %v1039 = vmul.f32 %v955, 0.5
        %v1040 = vmul.f32 %v953, 0.70710677
        %v1041 = vmul.f32 %v955, 0.70710677
        %vm1042 = vcmp.ge.f32.partialorder %v1040, 0.0
        %vm1043 = vcmp.ge.f32.partialorder %v1041, 0.0
        %v1044 = vsel %vm1042, 1.0, -1.0
        %v1045 = vsel %vm1043, 1.0, -1.0
        %v1046 = vand.u32 2147483647, %v1040
        %v1047 = vand.u32 2147483647, %v1041
        %v1048 = vmul.f32 %v1046, 0.3275911
        %v1049 = vmul.f32 %v1047, 0.3275911
        %v1050 = vadd.f32 %v1048, 1.0
        %v1051 = vadd.f32 %v1049, 1.0
        %v1052 = vrcp.pop %v1050
        %v1053 = vmul.f32 %v1050, %v1052
        %v1054 = vsub.f32 1.0, %v1053
        %v1055 = vmul.f32 %v1052, %v1054
        %v1056 = vadd.f32 %v1052, %v1055
        %vm1057 = vweird.f32 %v1050
        %vm1058 = vweird.f32 %v1052
        %vm1059 = vmor %vm1057, %vm1058
        %v1060 = vsel %vm1059, %v1052, %v1056
        %v1061 = vand.u32 2147483647, %v1050
        %vm1062 = vcmp.eq.f32.partialorder %v1061, 8.507059e+37
        %v1063 = vand.u32 %v1050, 2147483648
        %v1064 = vor.u32 1.1754944e-38, %v1063
        %v1065 = vsel %vm1062, %v1064, %v1060
        %v1066 = vmul.f32 1.0, %v1065
        %v1067 = vrcp.pop %v1051
        %v1068 = vmul.f32 %v1051, %v1067
        %v1069 = vsub.f32 1.0, %v1068
        %v1070 = vmul.f32 %v1067, %v1069
        %v1071 = vadd.f32 %v1067, %v1070
        %vm1072 = vweird.f32 %v1051
        %vm1073 = vweird.f32 %v1067
        %vm1074 = vmor %vm1072, %vm1073
        %v1075 = vsel %vm1074, %v1067, %v1071
        %v1076 = vand.u32 2147483647, %v1051
        %vm1077 = vcmp.eq.f32.partialorder %v1076, 8.507059e+37
        %v1078 = vand.u32 %v1051, 2147483648
        %v1079 = vor.u32 1.1754944e-38, %v1078
        %v1080 = vsel %vm1077, %v1079, %v1075
        %v1081 = vmul.f32 1.0, %v1080
        %v1082 = vmul.f32 %v1066, 1.0614054
        %v1083 = vmul.f32 %v1081, 1.0614054
        %v1084 = vadd.f32 %v1082, -1.4531521
        %v1085 = vadd.f32 %v1083, -1.4531521
        %v1086 = vmul.f32 %v1066, %v1084
        %v1087 = vmul.f32 %v1081, %v1085
        %v1088 = vadd.f32 %v1086, 1.4214138
        %v1089 = vadd.f32 %v1087, 1.4214138
        %v1090 = vmul.f32 %v1066, %v1088
        %v1091 = vmul.f32 %v1081, %v1089
        %v1092 = vadd.f32 %v1090, -0.28449672
        %v1093 = vadd.f32 %v1091, -0.28449672
        %v1094 = vmul.f32 %v1066, %v1092
        %v1095 = vmul.f32 %v1081, %v1093
        %v1096 = vadd.f32 %v1094, 0.2548296
        %v1097 = vadd.f32 %v1095, 0.2548296
        %v1098 = vmul.f32 %v1066, %v1096
        %v1099 = vmul.f32 %v1081, %v1097
        %v1100 = vsub.f32 0.0, %v1046
        %v1101 = vsub.f32 0.0, %v1047
        %v1102 = vmul.f32 %v1100, %v1046
        %v1103 = vmul.f32 %v1101, %v1047
        %v1104 = vmul.f32 %v1102, 1.442695
        %v1105 = vpow.pop %v1104
        %v1106 = vmul.f32 %v1103, 1.442695
        %v1107 = vpow.pop %v1106
        %v1108 = vmul.f32 %v1098, %v1105
        %v1109 = vmul.f32 %v1099, %v1107
        %v1110 = vsub.f32 1.0, %v1108
        %v1111 = vsub.f32 1.0, %v1109
        %v1112 = vmul.f32 %v1044, %v1110
        %v1113 = vmul.f32 %v1045, %v1111
        %v1114 = vadd.f32 %v1112, 1.0
        %v1115 = vadd.f32 %v1113, 1.0
        %v1116 = vmul.f32 %v1038, %v1114
        %v1117 = vmul.f32 %v1039, %v1115
        %v1118 = vmul.f32 %v952, %v1116
        %v1119 = vmul.f32 %v954, %v1117
        %v1120 = vadd.f32 %v1036, %v1118
        %v1121 = vadd.f32 %v1037, %v1119
        %vm1122 = vcmask 785408
        %v1124 = vsel %vm1122, %v1120, 0
        %v1127 = vsel %vm1122, %v1121, 0
        %1129 = vmatpush.msra.mxu0 0.0
        %1130 = vmatpush.msra.mxu0 0.0
        %1131 = vmatpush.msra.mxu0 0.0
        %1132 = vmatpush.msra.mxu0 0.0
        %1133 = vmatpush.msra.mxu0 %v316
        %1134 = vmatpush.msra.mxu0 %v315
        %1135 = vmatpush.msra.mxu0 %v314
        %1136 = vmatpush.msra.mxu0 %v313
        %1137 = vmatpush.msra.mxu0 %v312
        %1138 = vmatpush.msra.mxu0 %v311
        %1139 = vmatpush.msra.mxu0 %v310
        %1140 = vmatpush.msra.mxu0 %v309
        %1141 = vmatpush.msra.mxu0 %v308
        %1142 = vmatpush.msra.mxu0 %v307
        %1143 = vmatpush.msra.mxu0 %v306
        %1144 = vmatpush.msra.mxu0 %v305
        %1145 = vmatmul.f32.gmra.mxu0 %v1124
        %v1146 = vpop.f32.mrf.mxu0
        %v1147 = vadd.f32 0.0, %v1146
        %1148 = vmatmul.f32.gmra.mxu0 %v1127
        %v1149 = vpop.f32.mrf.mxu0
        %v1150 = vadd.f32 0.0, %v1149
        %1151 = vdwg.mxu0
        %v1152 = vadd.f32 %v388, %v1147
        %v1153 = vadd.f32 %v391, %v1150
        %v1154 = vperm.slane %v301, 2
        %v1155 = vadd.f32 %v1152, %v1154
        %v1156 = vadd.f32 %v1153, %v1154
        %s1157 = sld [smem:[#allocation2 + $0x1]]
        %s1158 = scalar_lea.vmem %s4, 192
        %v1159 = vld [vmem:[%s1158] sm:$0xff]
        %v1160 = vld [vmem:[%s1158 + $0x8] sm:$0xff]
        %v1161 = vld [vmem:[%s1158 + $0x10] sm:$0xff]
        %v1162 = vld [vmem:[%s1158 + $0x18] sm:$0xff]
        %v1163 = vld [vmem:[%s1158 + $0x20] sm:$0xff]
        %v1164 = vld [vmem:[%s1158 + $0x28] sm:$0xff]
        %v1165 = vld [vmem:[%s1158 + $0x30] sm:$0xff]
        %v1166 = vld [vmem:[%s1158 + $0x38] sm:$0xff]
        %v1167 = vld [vmem:[%s1158 + $0x40] sm:$0xff]
        %v1168 = vld [vmem:[%s1158 + $0x48] sm:$0xff]
        %v1169 = vld [vmem:[%s1158 + $0x50] sm:$0xff]
        %v1170 = vld [vmem:[%s1158 + $0x58] sm:$0xff]
        %v1171 = vld [vmem:[%s1158 + $0x60] sm:$0xff]
        %v1172 = vld [vmem:[%s1158 + $0x68] sm:$0xff]
        %v1173 = vld [vmem:[%s1158 + $0x70] sm:$0xff]
        %v1174 = vld [vmem:[%s1158 + $0x78] sm:$0xff]
        %v1175 = vld [vmem:[%s1158 + $0x80] sm:$0xff]
        %v1176 = vld [vmem:[%s1158 + $0x88] sm:$0xff]
        %v1177 = vld [vmem:[%s1158 + $0x90] sm:$0xff]
        %v1178 = vld [vmem:[%s1158 + $0x98] sm:$0xff]
        %v1179 = vld [vmem:[%s1158 + $0xa0] sm:$0xff]
        %v1180 = vld [vmem:[%s1158 + $0xa8] sm:$0xff]
        %v1181 = vld [vmem:[%s1158 + $0xb0] sm:$0xff]
        %v1182 = vld [vmem:[%s1158 + $0xb8] sm:$0xff]
        %v1183 = vsel %vm418, %v1155, 0.0
        %1184 = vadd.xlane.f32.xlu0 %v1183
        %v1185 = vpop.xlane.xlu0 %1184
        %v1186 = vsel %vm418, %v1156, 0.0
        %1187 = vadd.xlane.f32.xlu0 %v1186
        %v1188 = vpop.xlane.xlu0 %1187
        %v1189 = vmul.f32 %v1185, %v431
        %v1190 = vmul.f32 %v1188, %v431
        %v1191 = vsub.f32 %v1155, %v1189
        %v1192 = vsub.f32 %v1156, %v1190
        %v1193 = vmul.f32 %v1191, %v1191
        %v1194 = vmul.f32 %v1192, %v1192
        %v1195 = vsel %vm418, %v1193, 0.0
        %1196 = vadd.xlane.f32.xlu0 %v1195
        %v1197 = vpop.xlane.xlu0 %1196
        %v1198 = vsel %vm418, %v1194, 0.0
        %1199 = vadd.xlane.f32.xlu0 %v1198
        %v1200 = vpop.xlane.xlu0 %1199
        %v1201 = vmul.f32 %v1197, %v431
        %v1202 = vmul.f32 %v1200, %v431
        %v1203 = vadd.f32 %v1201, 1e-05
        %v1204 = vadd.f32 %v1202, 1e-05
        %v1205 = vrsqrt.pop %v1203
        %v1206 = vmul.f32 %v1205, %v1203
        %v1207 = vmul.f32 %v1206, %v1205
        %v1208 = vmul.f32 0.5, %v1207
        %v1209 = vsub.f32 1.5, %v1208
        %v1210 = vmul.f32 %v1205, %v1209
        %vm1211 = vweird.f32 %v1203
        %vm1212 = vweird.f32 %v1205
        %vm1213 = vmor %vm1211, %vm1212
        %v1214 = vsel %vm1213, %v1205, %v1210
        %v1215 = vrsqrt.pop %v1204
        %v1216 = vmul.f32 %v1215, %v1204
        %v1217 = vmul.f32 %v1216, %v1215
        %v1218 = vmul.f32 0.5, %v1217
        %v1219 = vsub.f32 1.5, %v1218
        %v1220 = vmul.f32 %v1215, %v1219
        %vm1221 = vweird.f32 %v1204
        %vm1222 = vweird.f32 %v1215
        %vm1223 = vmor %vm1221, %vm1222
        %v1224 = vsel %vm1223, %v1215, %v1220
        %v1225 = vmul.f32 %v1191, %v1214
        %v1226 = vmul.f32 %v1192, %v1224
        %v1227 = vperm.slane %v301, 3
        %v1228 = vmul.f32 %v1225, %v1227
        %v1229 = vmul.f32 %v1226, %v1227
        %v1230 = vperm.slane %v301, 4
        %v1231 = vadd.f32 %v1228, %v1230
        %v1232 = vadd.f32 %v1229, %v1230
        %1233 = vmatpush.msra.mxu0 0.0
        %1234 = vmatpush.msra.mxu0 0.0
        %1235 = vmatpush.msra.mxu0 0.0
        %1236 = vmatpush.msra.mxu0 0.0
        %1237 = vmatpush.msra.mxu0 0.0
        %1238 = vmatpush.msra.mxu0 0.0
        %1239 = vmatpush.msra.mxu0 0.0
        %1240 = vmatpush.msra.mxu0 0.0
        %1241 = vmatpush.msra.mxu0 0.0
        %1242 = vmatpush.msra.mxu0 0.0
        %1243 = vmatpush.msra.mxu0 0.0
        %1244 = vmatpush.msra.mxu0 0.0
        %1245 = vmatpush.msra.mxu0 0.0
        %1246 = vmatpush.msra.mxu0 0.0
        %1247 = vmatpush.msra.mxu0 %v1232
        %1248 = vmatpush.msra.mxu0 %v1231
        %1249 = vmatmul.f32.gmra.mxu0 %v478
        %v1250 = vpop.f32.mrf.mxu0
        %v1251 = vadd.f32 0.0, %v1250
        %1252 = vmatmul.f32.gmra.mxu0 %v481
        %v1253 = vpop.f32.mrf.mxu0
        %v1254 = vadd.f32 0.0, %v1253
        %1255 = vdwg.mxu0
        %v1256 = vmul.f32 %v1251, %v1251
        %v1257 = vmul.f32 %v1254, %v1254
        %v1258 = vadd.f32 %v1256, %v1257
        %v1259 = vsel %vm418, %v1258, 0.0
        %1260 = vadd.xlane.f32.xlu0 %v1259
        %v1261 = vpop.xlane.xlu0 %1260
        %v1262 = vmul.f32 %v358, %v1261
        %v1263 = vsel %vm363, %v1262, 0.0
        %v1264 = vrot.slane %v1263, 4
        %v1265 = vadd.f32 %v1263, %v1264
        %v1266 = vrot.slane %v1265, 2
        %v1267 = vadd.f32 %v1265, %v1266
        %v1268 = vrot.slane %v1267, 1
        %v1269 = vadd.f32 %v1267, %v1268
        %vm1270 = vcmp.lt.f32.partialorder %v1261, %v1269
        %v1271 = vsel %vm1270, 1, 0
        %v1272 = vcvt.s32.f32 %v1271
        %vm1273 = vcmp.eq.f32.partialorder %v1261, %v1269
        %v1274 = vsel %vm1273, 1, 0
        %v1275 = vcvt.s32.f32 %v1274
        %v1276 = vmul.f32 %v361, %v1275
        %v1277 = vadd.f32 %v1272, %v1276
        %v1278 = vsel %vm363, %v1277, 0.0
        %v1279 = vrot.slane %v1278, 4
        %v1280 = vadd.f32 %v1278, %v1279
        %v1281 = vrot.slane %v1280, 2
        %v1282 = vadd.f32 %v1280, %v1281
        %v1283 = vrot.slane %v1282, 1
        %v1284 = vadd.f32 %v1282, %v1283
        %vm1285 = vcmp.eq.f32.partialorder %v1284, 3.0
        %v1286 = vsel %vm1285, 1, 0
        %v1287 = vcvt.s32.f32 %v1286
        %v1288 = vmul.f32 %v1269, %v1287
        %v1289 = vsel %vm363, %v1288, 0.0
        %1290 = vadd.xlane.f32.xlu0 %v1289
        %v1291 = vpop.xlane.xlu0 %1290
        %v1292 = vadd.f32 %v1291, 1e-06
        %v1293 = vrcp.pop %v1292
        %v1294 = vmul.f32 %v1292, %v1293
        %v1295 = vsub.f32 1.0, %v1294
        %v1296 = vmul.f32 %v1293, %v1295
        %v1297 = vadd.f32 %v1293, %v1296
        %vm1298 = vweird.f32 %v1292
        %vm1299 = vweird.f32 %v1293
        %vm1300 = vmor %vm1298, %vm1299
        %v1301 = vsel %vm1300, %v1293, %v1297
        %v1302 = vand.u32 2147483647, %v1292
        %vm1303 = vcmp.eq.f32.partialorder %v1302, 8.507059e+37
        %v1304 = vand.u32 %v1292, 2147483648
        %v1305 = vor.u32 1.1754944e-38, %v1304
        %v1306 = vsel %vm1303, %v1305, %v1301
        %v1307 = vmul.f32 %v1261, %v1306
        %v1308 = vstv %s1157
        %vm1309 = vcmp.gt.f32.partialorder %v1307, %v1308
        %v1310 = vsel %vm1309, 1, 0
        %v1311 = vcvt.s32.f32 %v1310
        %v1312 = vmul.f32 %v1251, %v1311
        %v1313 = vmul.f32 %v1254, %v1311
        %v1314 = vperm.slane %v301, 7
        %v1315 = vmul.f32 %v1251, %v1314
        %v1316 = vperm.slane %v302, 0
        %v1317 = vmul.f32 %v1254, %v1316
        %v1318 = vsub.f32 %v1315, %v1317
        %v1319 = vperm.slane %v302, 1
        %v1320 = vmul.f32 %v1312, %v1319
        %v1321 = vadd.f32 %v1318, %v1320
        %v1322 = vperm.slane %v302, 2
        %v1323 = vmul.f32 %v1313, %v1322
        %v1324 = vsub.f32 %v1321, %v1323
        %v1325 = vmul.f32 %v1251, %v1316
        %v1326 = vmul.f32 %v1254, %v1314
        %v1327 = vadd.f32 %v1325, %v1326
        %v1328 = vmul.f32 %v1312, %v1322
        %v1329 = vadd.f32 %v1327, %v1328
        %v1330 = vmul.f32 %v1313, %v1319
        %v1331 = vadd.f32 %v1329, %v1330
        %1332 = vmatpush.msra.mxu0 0.0
        %1333 = vmatpush.msra.mxu0 0.0
        %1334 = vmatpush.msra.mxu0 0.0
        %1335 = vmatpush.msra.mxu0 0.0
        %1336 = vmatpush.msra.mxu0 0.0
        %1337 = vmatpush.msra.mxu0 0.0
        %1338 = vmatpush.msra.mxu0 0.0
        %1339 = vmatpush.msra.mxu0 0.0
        %1340 = vmatpush.msra.mxu0 0.0
        %1341 = vmatpush.msra.mxu0 0.0
        %1342 = vmatpush.msra.mxu0 0.0
        %1343 = vmatpush.msra.mxu0 0.0
        %1344 = vmatpush.msra.mxu0 0.0
        %1345 = vmatpush.msra.mxu0 0.0
        %1346 = vmatpush.msra.mxu0 %v1331
        %1347 = vmatpush.msra.mxu0 %v1324
        %1348 = vmatmul.f32.gmra.mxu0 %v583
        %v1349 = vpop.f32.mrf.mxu0
        %v1350 = vadd.f32 0.0, %v1349
        %1351 = vmatmul.f32.gmra.mxu0 %v586
        %v1352 = vpop.f32.mrf.mxu0
        %v1353 = vadd.f32 0.0, %v1352
        %1354 = vmatmul.f32.gmra.mxu0 %v589
        %v1355 = vpop.f32.mrf.mxu0
        %v1356 = vadd.f32 0.0, %v1355
        %1357 = vmatmul.f32.gmra.mxu0 %v592
        %v1358 = vpop.f32.mrf.mxu0
        %v1359 = vadd.f32 0.0, %v1358
        %1360 = vmatmul.f32.gmra.mxu0 %v595
        %v1361 = vpop.f32.mrf.mxu0
        %v1362 = vadd.f32 0.0, %v1361
        %1363 = vmatmul.f32.gmra.mxu0 %v598
        %v1364 = vpop.f32.mrf.mxu0
        %v1365 = vadd.f32 0.0, %v1364
        %1366 = vdwg.mxu0
        %v1367 = vsel %vm418, %v1350, 0.0
        %1368 = vadd.xlane.f32.xlu0 %v1367
        %v1369 = vpop.xlane.xlu0 %1368
        %v1370 = vsel %vm418, %v1353, 0.0
        %1371 = vadd.xlane.f32.xlu0 %v1370
        %v1372 = vpop.xlane.xlu0 %1371
        %v1373 = vsel %vm418, %v1356, 0.0
        %1374 = vadd.xlane.f32.xlu0 %v1373
        %v1375 = vpop.xlane.xlu0 %1374
        %v1376 = vsel %vm418, %v1359, 0.0
        %1377 = vadd.xlane.f32.xlu0 %v1376
        %v1378 = vpop.xlane.xlu0 %1377
        %v1379 = vsel %vm418, %v1362, 0.0
        %1380 = vadd.xlane.f32.xlu0 %v1379
        %v1381 = vpop.xlane.xlu0 %1380
        %v1382 = vsel %vm418, %v1365, 0.0
        %1383 = vadd.xlane.f32.xlu0 %v1382
        %v1384 = vpop.xlane.xlu0 %1383
        %v1385 = vmul.f32 %v1369, %v431
        %v1386 = vmul.f32 %v1372, %v431
        %v1387 = vmul.f32 %v1375, %v431
        %v1388 = vmul.f32 %v1378, %v431
        %v1389 = vmul.f32 %v1381, %v431
        %v1390 = vmul.f32 %v1384, %v431
        %v1391 = vsub.f32 %v1350, %v1385
        %v1392 = vsub.f32 %v1353, %v1386
        %v1393 = vsub.f32 %v1356, %v1387
        %v1394 = vsub.f32 %v1359, %v1388
        %v1395 = vsub.f32 %v1362, %v1389
        %v1396 = vsub.f32 %v1365, %v1390
        %v1397 = vmul.f32 %v1391, %v1391
        %v1398 = vmul.f32 %v1392, %v1392
        %v1399 = vmul.f32 %v1393, %v1393
        %v1400 = vmul.f32 %v1394, %v1394
        %v1401 = vmul.f32 %v1395, %v1395
        %v1402 = vmul.f32 %v1396, %v1396
        %v1403 = vsel %vm418, %v1397, 0.0
        %1404 = vadd.xlane.f32.xlu0 %v1403
        %v1405 = vpop.xlane.xlu0 %1404
        %v1406 = vsel %vm418, %v1398, 0.0
        %1407 = vadd.xlane.f32.xlu0 %v1406
        %v1408 = vpop.xlane.xlu0 %1407
        %v1409 = vsel %vm418, %v1399, 0.0
        %1410 = vadd.xlane.f32.xlu0 %v1409
        %v1411 = vpop.xlane.xlu0 %1410
        %v1412 = vsel %vm418, %v1400, 0.0
        %1413 = vadd.xlane.f32.xlu0 %v1412
        %v1414 = vpop.xlane.xlu0 %1413
        %v1415 = vsel %vm418, %v1401, 0.0
        %1416 = vadd.xlane.f32.xlu0 %v1415
        %v1417 = vpop.xlane.xlu0 %1416
        %v1418 = vsel %vm418, %v1402, 0.0
        %1419 = vadd.xlane.f32.xlu0 %v1418
        %v1420 = vpop.xlane.xlu0 %1419
        %v1421 = vmul.f32 %v1405, %v431
        %v1422 = vmul.f32 %v1408, %v431
        %v1423 = vmul.f32 %v1411, %v431
        %v1424 = vmul.f32 %v1414, %v431
        %v1425 = vmul.f32 %v1417, %v431
        %v1426 = vmul.f32 %v1420, %v431
        %v1427 = vadd.f32 %v1421, 1e-05
        %v1428 = vadd.f32 %v1422, 1e-05
        %v1429 = vadd.f32 %v1423, 1e-05
        %v1430 = vadd.f32 %v1424, 1e-05
        %v1431 = vadd.f32 %v1425, 1e-05
        %v1432 = vadd.f32 %v1426, 1e-05
        %v1433 = vrsqrt.pop %v1427
        %v1434 = vmul.f32 %v1433, %v1427
        %v1435 = vmul.f32 %v1434, %v1433
        %v1436 = vmul.f32 0.5, %v1435
        %v1437 = vsub.f32 1.5, %v1436
        %v1438 = vmul.f32 %v1433, %v1437
        %vm1439 = vweird.f32 %v1427
        %vm1440 = vweird.f32 %v1433
        %vm1441 = vmor %vm1439, %vm1440
        %v1442 = vsel %vm1441, %v1433, %v1438
        %v1443 = vrsqrt.pop %v1428
        %v1444 = vmul.f32 %v1443, %v1428
        %v1445 = vmul.f32 %v1444, %v1443
        %v1446 = vmul.f32 0.5, %v1445
        %v1447 = vsub.f32 1.5, %v1446
        %v1448 = vmul.f32 %v1443, %v1447
        %vm1449 = vweird.f32 %v1428
        %vm1450 = vweird.f32 %v1443
        %vm1451 = vmor %vm1449, %vm1450
        %v1452 = vsel %vm1451, %v1443, %v1448
        %v1453 = vrsqrt.pop %v1429
        %v1454 = vmul.f32 %v1453, %v1429
        %v1455 = vmul.f32 %v1454, %v1453
        %v1456 = vmul.f32 0.5, %v1455
        %v1457 = vsub.f32 1.5, %v1456
        %v1458 = vmul.f32 %v1453, %v1457
        %vm1459 = vweird.f32 %v1429
        %vm1460 = vweird.f32 %v1453
        %vm1461 = vmor %vm1459, %vm1460
        %v1462 = vsel %vm1461, %v1453, %v1458
        %v1463 = vrsqrt.pop %v1430
        %v1464 = vmul.f32 %v1463, %v1430
        %v1465 = vmul.f32 %v1464, %v1463
        %v1466 = vmul.f32 0.5, %v1465
        %v1467 = vsub.f32 1.5, %v1466
        %v1468 = vmul.f32 %v1463, %v1467
        %vm1469 = vweird.f32 %v1430
        %vm1470 = vweird.f32 %v1463
        %vm1471 = vmor %vm1469, %vm1470
        %v1472 = vsel %vm1471, %v1463, %v1468
        %v1473 = vrsqrt.pop %v1431
        %v1474 = vmul.f32 %v1473, %v1431
        %v1475 = vmul.f32 %v1474, %v1473
        %v1476 = vmul.f32 0.5, %v1475
        %v1477 = vsub.f32 1.5, %v1476
        %v1478 = vmul.f32 %v1473, %v1477
        %vm1479 = vweird.f32 %v1431
        %vm1480 = vweird.f32 %v1473
        %vm1481 = vmor %vm1479, %vm1480
        %v1482 = vsel %vm1481, %v1473, %v1478
        %v1483 = vrsqrt.pop %v1432
        %v1484 = vmul.f32 %v1483, %v1432
        %v1485 = vmul.f32 %v1484, %v1483
        %v1486 = vmul.f32 0.5, %v1485
        %v1487 = vsub.f32 1.5, %v1486
        %v1488 = vmul.f32 %v1483, %v1487
        %vm1489 = vweird.f32 %v1432
        %vm1490 = vweird.f32 %v1483
        %vm1491 = vmor %vm1489, %vm1490
        %v1492 = vsel %vm1491, %v1483, %v1488
        %v1493 = vmul.f32 %v1391, %v1442
        %v1494 = vmul.f32 %v1392, %v1452
        %v1495 = vmul.f32 %v1393, %v1462
        %v1496 = vmul.f32 %v1394, %v1472
        %v1497 = vmul.f32 %v1395, %v1482
        %v1498 = vmul.f32 %v1396, %v1492
        %v1499 = vperm.slane %v301, 5
        %v1500 = vmul.f32 %v1493, %v1499
        %v1501 = vmul.f32 %v1494, %v1499
        %v1502 = vmul.f32 %v1495, %v1499
        %v1503 = vmul.f32 %v1496, %v1499
        %v1504 = vmul.f32 %v1497, %v1499
        %v1505 = vmul.f32 %v1498, %v1499
        %v1506 = vperm.slane %v301, 6
        %v1507 = vadd.f32 %v1500, %v1506
        %v1508 = vadd.f32 %v1501, %v1506
        %v1509 = vadd.f32 %v1502, %v1506
        %v1510 = vadd.f32 %v1503, %v1506
        %v1511 = vadd.f32 %v1504, %v1506
        %v1512 = vadd.f32 %v1505, %v1506
        %v1513 = vmul.f32 %v1509, %v346
        %v1514 = vmul.f32 %v1510, %v347
        %v1515 = vmul.f32 %v1511, %v352
        %v1516 = vmul.f32 %v1512, %v353
        %v1518 = vsel %vm418, %v1507, 0
        %v1521 = vsel %vm418, %v1508, 0
        %1523 = vmatpush.msra.mxu0 0.0
        %1524 = vmatpush.msra.mxu0 0.0
        %1525 = vmatpush.msra.mxu0 0.0
        %1526 = vmatpush.msra.mxu0 0.0
        %1527 = vmatpush.msra.mxu0 0.0
        %1528 = vmatpush.msra.mxu0 0.0
        %1529 = vmatpush.msra.mxu0 0.0
        %1530 = vmatpush.msra.mxu0 0.0
        %1531 = vmatpush.msra.mxu0 0.0
        %1532 = vmatpush.msra.mxu0 0.0
        %1533 = vmatpush.msra.mxu0 0.0
        %1534 = vmatpush.msra.mxu0 0.0
        %1535 = vmatpush.msra.mxu0 %v1173
        %1536 = vmatpush.msra.mxu0 %v1171
        %1537 = vmatpush.msra.mxu0 %v1169
        %1538 = vmatpush.msra.mxu0 %v1167
        %1539 = vmatmul.f32.gmra.mxu0 %v1518
        %v1540 = vpop.f32.mrf.mxu0
        %v1541 = vadd.f32 0.0, %v1540
        %1542 = vmatmul.f32.gmra.mxu0 %v1521
        %v1543 = vpop.f32.mrf.mxu0
        %v1544 = vadd.f32 0.0, %v1543
        %1545 = vdwg.mxu0
        %1546 = vmatpush.msra.mxu0 0.0
        %1547 = vmatpush.msra.mxu0 0.0
        %1548 = vmatpush.msra.mxu0 0.0
        %1549 = vmatpush.msra.mxu0 0.0
        %1550 = vmatpush.msra.mxu0 0.0
        %1551 = vmatpush.msra.mxu0 0.0
        %1552 = vmatpush.msra.mxu0 0.0
        %1553 = vmatpush.msra.mxu0 0.0
        %1554 = vmatpush.msra.mxu0 0.0
        %1555 = vmatpush.msra.mxu0 0.0
        %1556 = vmatpush.msra.mxu0 0.0
        %1557 = vmatpush.msra.mxu0 0.0
        %1558 = vmatpush.msra.mxu0 %v1174
        %1559 = vmatpush.msra.mxu0 %v1172
        %1560 = vmatpush.msra.mxu0 %v1170
        %1561 = vmatpush.msra.mxu0 %v1168
        %1562 = vmatmul.f32.gmra.mxu0 %v1518
        %v1563 = vpop.f32.mrf.mxu0
        %v1564 = vadd.f32 0.0, %v1563
        %1565 = vmatmul.f32.gmra.mxu0 %v1521
        %v1566 = vpop.f32.mrf.mxu0
        %v1567 = vadd.f32 0.0, %v1566
        %1568 = vdwg.mxu0
        %v1570 = vsel %vm418, %v1513, 0
        %v1573 = vsel %vm418, %v1514, 0
        %1575 = vmatpush.msra.mxu0 0.0
        %1576 = vmatpush.msra.mxu0 0.0
        %1577 = vmatpush.msra.mxu0 0.0
        %1578 = vmatpush.msra.mxu0 0.0
        %1579 = vmatpush.msra.mxu0 0.0
        %1580 = vmatpush.msra.mxu0 0.0
        %1581 = vmatpush.msra.mxu0 0.0
        %1582 = vmatpush.msra.mxu0 0.0
        %1583 = vmatpush.msra.mxu0 0.0
        %1584 = vmatpush.msra.mxu0 0.0
        %1585 = vmatpush.msra.mxu0 0.0
        %1586 = vmatpush.msra.mxu0 0.0
        %1587 = vmatpush.msra.mxu0 %v1165
        %1588 = vmatpush.msra.mxu0 %v1163
        %1589 = vmatpush.msra.mxu0 %v1161
        %1590 = vmatpush.msra.mxu0 %v1159
        %1591 = vmatmul.f32.gmra.mxu0 %v1570
        %v1592 = vpop.f32.mrf.mxu0
        %v1593 = vadd.f32 %v1541, %v1592
        %1594 = vmatmul.f32.gmra.mxu0 %v1573
        %v1595 = vpop.f32.mrf.mxu0
        %v1596 = vadd.f32 %v1544, %v1595
        %1597 = vdwg.mxu0
        %1598 = vmatpush.msra.mxu0 0.0
        %1599 = vmatpush.msra.mxu0 0.0
        %1600 = vmatpush.msra.mxu0 0.0
        %1601 = vmatpush.msra.mxu0 0.0
        %1602 = vmatpush.msra.mxu0 0.0
        %1603 = vmatpush.msra.mxu0 0.0
        %1604 = vmatpush.msra.mxu0 0.0
        %1605 = vmatpush.msra.mxu0 0.0
        %1606 = vmatpush.msra.mxu0 0.0
        %1607 = vmatpush.msra.mxu0 0.0
        %1608 = vmatpush.msra.mxu0 0.0
        %1609 = vmatpush.msra.mxu0 0.0
        %1610 = vmatpush.msra.mxu0 %v1166
        %1611 = vmatpush.msra.mxu0 %v1164
        %1612 = vmatpush.msra.mxu0 %v1162
        %1613 = vmatpush.msra.mxu0 %v1160
        %1614 = vmatmul.f32.gmra.mxu0 %v1570
        %v1615 = vpop.f32.mrf.mxu0
        %v1616 = vadd.f32 %v1564, %v1615
        %1617 = vmatmul.f32.gmra.mxu0 %v1573
        %v1618 = vpop.f32.mrf.mxu0
        %v1619 = vadd.f32 %v1567, %v1618
        %1620 = vdwg.mxu0
        %v1622 = vsel %vm418, %v1515, 0
        %v1625 = vsel %vm418, %v1516, 0
        %1627 = vmatpush.msra.mxu0 0.0
        %1628 = vmatpush.msra.mxu0 0.0
        %1629 = vmatpush.msra.mxu0 0.0
        %1630 = vmatpush.msra.mxu0 0.0
        %1631 = vmatpush.msra.mxu0 0.0
        %1632 = vmatpush.msra.mxu0 0.0
        %1633 = vmatpush.msra.mxu0 0.0
        %1634 = vmatpush.msra.mxu0 0.0
        %1635 = vmatpush.msra.mxu0 0.0
        %1636 = vmatpush.msra.mxu0 0.0
        %1637 = vmatpush.msra.mxu0 0.0
        %1638 = vmatpush.msra.mxu0 0.0
        %1639 = vmatpush.msra.mxu0 %v1181
        %1640 = vmatpush.msra.mxu0 %v1179
        %1641 = vmatpush.msra.mxu0 %v1177
        %1642 = vmatpush.msra.mxu0 %v1175
        %1643 = vmatmul.f32.gmra.mxu0 %v1622
        %v1644 = vpop.f32.mrf.mxu0
        %v1645 = vadd.f32 0.0, %v1644
        %1646 = vmatmul.f32.gmra.mxu0 %v1625
        %v1647 = vpop.f32.mrf.mxu0
        %v1648 = vadd.f32 0.0, %v1647
        %1649 = vdwg.mxu0
        %1650 = vmatpush.msra.mxu0 0.0
        %1651 = vmatpush.msra.mxu0 0.0
        %1652 = vmatpush.msra.mxu0 0.0
        %1653 = vmatpush.msra.mxu0 0.0
        %1654 = vmatpush.msra.mxu0 0.0
        %1655 = vmatpush.msra.mxu0 0.0
        %1656 = vmatpush.msra.mxu0 0.0
        %1657 = vmatpush.msra.mxu0 0.0
        %1658 = vmatpush.msra.mxu0 0.0
        %1659 = vmatpush.msra.mxu0 0.0
        %1660 = vmatpush.msra.mxu0 0.0
        %1661 = vmatpush.msra.mxu0 0.0
        %1662 = vmatpush.msra.mxu0 %v1182
        %1663 = vmatpush.msra.mxu0 %v1180
        %1664 = vmatpush.msra.mxu0 %v1178
        %1665 = vmatpush.msra.mxu0 %v1176
        %1666 = vmatmul.f32.gmra.mxu0 %v1622
        %v1667 = vpop.f32.mrf.mxu0
        %v1668 = vadd.f32 0.0, %v1667
        %1669 = vmatmul.f32.gmra.mxu0 %v1625
        %v1670 = vpop.f32.mrf.mxu0
        %v1671 = vadd.f32 0.0, %v1670
        %1672 = vdwg.mxu0
        %v1673 = vadd.f32 %v1593, %v1645
        %v1674 = vadd.f32 %v1616, %v1668
        %v1675 = vadd.f32 %v1596, %v1648
        %v1676 = vadd.f32 %v1619, %v1671
        %v1677 = vperm.slane %v303, 1
        %v1678 = vperm.slane %v303, 3
        %v1681 = vperm.slane %v1677, 1
        %v1682 = vperm.slane %v1678, 1
        %v1683 = vadd.f32 %v1673, %v1681
        %v1684 = vadd.f32 %v1674, %v1682
        %v1685 = vadd.f32 %v1675, %v1681
        %v1686 = vadd.f32 %v1676, %v1682
        %v1687 = vmul.f32 %v1683, 0.5
        %v1688 = vmul.f32 %v1685, 0.5
        %v1689 = vmul.f32 %v1683, 0.70710677
        %v1690 = vmul.f32 %v1685, 0.70710677
        %vm1691 = vcmp.ge.f32.partialorder %v1689, 0.0
        %vm1692 = vcmp.ge.f32.partialorder %v1690, 0.0
        %v1693 = vsel %vm1691, 1.0, -1.0
        %v1694 = vsel %vm1692, 1.0, -1.0
        %v1695 = vand.u32 2147483647, %v1689
        %v1696 = vand.u32 2147483647, %v1690
        %v1697 = vmul.f32 %v1695, 0.3275911
        %v1698 = vmul.f32 %v1696, 0.3275911
        %v1699 = vadd.f32 %v1697, 1.0
        %v1700 = vadd.f32 %v1698, 1.0
        %v1701 = vrcp.pop %v1699
        %v1702 = vmul.f32 %v1699, %v1701
        %v1703 = vsub.f32 1.0, %v1702
        %v1704 = vmul.f32 %v1701, %v1703
        %v1705 = vadd.f32 %v1701, %v1704
        %vm1706 = vweird.f32 %v1699
        %vm1707 = vweird.f32 %v1701
        %vm1708 = vmor %vm1706, %vm1707
        %v1709 = vsel %vm1708, %v1701, %v1705
        %v1710 = vand.u32 2147483647, %v1699
        %vm1711 = vcmp.eq.f32.partialorder %v1710, 8.507059e+37
        %v1712 = vand.u32 %v1699, 2147483648
        %v1713 = vor.u32 1.1754944e-38, %v1712
        %v1714 = vsel %vm1711, %v1713, %v1709
        %v1715 = vmul.f32 1.0, %v1714
        %v1716 = vrcp.pop %v1700
        %v1717 = vmul.f32 %v1700, %v1716
        %v1718 = vsub.f32 1.0, %v1717
        %v1719 = vmul.f32 %v1716, %v1718
        %v1720 = vadd.f32 %v1716, %v1719
        %vm1721 = vweird.f32 %v1700
        %vm1722 = vweird.f32 %v1716
        %vm1723 = vmor %vm1721, %vm1722
        %v1724 = vsel %vm1723, %v1716, %v1720
        %v1725 = vand.u32 2147483647, %v1700
        %vm1726 = vcmp.eq.f32.partialorder %v1725, 8.507059e+37
        %v1727 = vand.u32 %v1700, 2147483648
        %v1728 = vor.u32 1.1754944e-38, %v1727
        %v1729 = vsel %vm1726, %v1728, %v1724
        %v1730 = vmul.f32 1.0, %v1729
        %v1731 = vmul.f32 %v1715, 1.0614054
        %v1732 = vmul.f32 %v1730, 1.0614054
        %v1733 = vadd.f32 %v1731, -1.4531521
        %v1734 = vadd.f32 %v1732, -1.4531521
        %v1735 = vmul.f32 %v1715, %v1733
        %v1736 = vmul.f32 %v1730, %v1734
        %v1737 = vadd.f32 %v1735, 1.4214138
        %v1738 = vadd.f32 %v1736, 1.4214138
        %v1739 = vmul.f32 %v1715, %v1737
        %v1740 = vmul.f32 %v1730, %v1738
        %v1741 = vadd.f32 %v1739, -0.28449672
        %v1742 = vadd.f32 %v1740, -0.28449672
        %v1743 = vmul.f32 %v1715, %v1741
        %v1744 = vmul.f32 %v1730, %v1742
        %v1745 = vadd.f32 %v1743, 0.2548296
        %v1746 = vadd.f32 %v1744, 0.2548296
        %v1747 = vmul.f32 %v1715, %v1745
        %v1748 = vmul.f32 %v1730, %v1746
        %v1749 = vsub.f32 0.0, %v1695
        %v1750 = vsub.f32 0.0, %v1696
        %v1751 = vmul.f32 %v1749, %v1695
        %v1752 = vmul.f32 %v1750, %v1696
        %v1753 = vmul.f32 %v1751, 1.442695
        %v1754 = vpow.pop %v1753
        %v1755 = vmul.f32 %v1752, 1.442695
        %v1756 = vpow.pop %v1755
        %v1757 = vmul.f32 %v1747, %v1754
        %v1758 = vmul.f32 %v1748, %v1756
        %v1759 = vsub.f32 1.0, %v1757
        %v1760 = vsub.f32 1.0, %v1758
        %v1761 = vmul.f32 %v1693, %v1759
        %v1762 = vmul.f32 %v1694, %v1760
        %v1763 = vadd.f32 %v1761, 1.0
        %v1764 = vadd.f32 %v1762, 1.0
        %v1765 = vmul.f32 %v1687, %v1763
        %v1766 = vmul.f32 %v1688, %v1764
        %v1767 = vmul.f32 %v1684, %v1765
        %v1768 = vmul.f32 %v1686, %v1766
        %v1769 = vmul.f32 %v1684, 0.5
        %v1770 = vmul.f32 %v1686, 0.5
        %v1771 = vmul.f32 %v1684, 0.70710677
        %v1772 = vmul.f32 %v1686, 0.70710677
        %vm1773 = vcmp.ge.f32.partialorder %v1771, 0.0
        %vm1774 = vcmp.ge.f32.partialorder %v1772, 0.0
        %v1775 = vsel %vm1773, 1.0, -1.0
        %v1776 = vsel %vm1774, 1.0, -1.0
        %v1777 = vand.u32 2147483647, %v1771
        %v1778 = vand.u32 2147483647, %v1772
        %v1779 = vmul.f32 %v1777, 0.3275911
        %v1780 = vmul.f32 %v1778, 0.3275911
        %v1781 = vadd.f32 %v1779, 1.0
        %v1782 = vadd.f32 %v1780, 1.0
        %v1783 = vrcp.pop %v1781
        %v1784 = vmul.f32 %v1781, %v1783
        %v1785 = vsub.f32 1.0, %v1784
        %v1786 = vmul.f32 %v1783, %v1785
        %v1787 = vadd.f32 %v1783, %v1786
        %vm1788 = vweird.f32 %v1781
        %vm1789 = vweird.f32 %v1783
        %vm1790 = vmor %vm1788, %vm1789
        %v1791 = vsel %vm1790, %v1783, %v1787
        %v1792 = vand.u32 2147483647, %v1781
        %vm1793 = vcmp.eq.f32.partialorder %v1792, 8.507059e+37
        %v1794 = vand.u32 %v1781, 2147483648
        %v1795 = vor.u32 1.1754944e-38, %v1794
        %v1796 = vsel %vm1793, %v1795, %v1791
        %v1797 = vmul.f32 1.0, %v1796
        %v1798 = vrcp.pop %v1782
        %v1799 = vmul.f32 %v1782, %v1798
        %v1800 = vsub.f32 1.0, %v1799
        %v1801 = vmul.f32 %v1798, %v1800
        %v1802 = vadd.f32 %v1798, %v1801
        %vm1803 = vweird.f32 %v1782
        %vm1804 = vweird.f32 %v1798
        %vm1805 = vmor %vm1803, %vm1804
        %v1806 = vsel %vm1805, %v1798, %v1802
        %v1807 = vand.u32 2147483647, %v1782
        %vm1808 = vcmp.eq.f32.partialorder %v1807, 8.507059e+37
        %v1809 = vand.u32 %v1782, 2147483648
        %v1810 = vor.u32 1.1754944e-38, %v1809
        %v1811 = vsel %vm1808, %v1810, %v1806
        %v1812 = vmul.f32 1.0, %v1811
        %v1813 = vmul.f32 %v1797, 1.0614054
        %v1814 = vmul.f32 %v1812, 1.0614054
        %v1815 = vadd.f32 %v1813, -1.4531521
        %v1816 = vadd.f32 %v1814, -1.4531521
        %v1817 = vmul.f32 %v1797, %v1815
        %v1818 = vmul.f32 %v1812, %v1816
        %v1819 = vadd.f32 %v1817, 1.4214138
        %v1820 = vadd.f32 %v1818, 1.4214138
        %v1821 = vmul.f32 %v1797, %v1819
        %v1822 = vmul.f32 %v1812, %v1820
        %v1823 = vadd.f32 %v1821, -0.28449672
        %v1824 = vadd.f32 %v1822, -0.28449672
        %v1825 = vmul.f32 %v1797, %v1823
        %v1826 = vmul.f32 %v1812, %v1824
        %v1827 = vadd.f32 %v1825, 0.2548296
        %v1828 = vadd.f32 %v1826, 0.2548296
        %v1829 = vmul.f32 %v1797, %v1827
        %v1830 = vmul.f32 %v1812, %v1828
        %v1831 = vsub.f32 0.0, %v1777
        %v1832 = vsub.f32 0.0, %v1778
        %v1833 = vmul.f32 %v1831, %v1777
        %v1834 = vmul.f32 %v1832, %v1778
        %v1835 = vmul.f32 %v1833, 1.442695
        %v1836 = vpow.pop %v1835
        %v1837 = vmul.f32 %v1834, 1.442695
        %v1838 = vpow.pop %v1837
        %v1839 = vmul.f32 %v1829, %v1836
        %v1840 = vmul.f32 %v1830, %v1838
        %v1841 = vsub.f32 1.0, %v1839
        %v1842 = vsub.f32 1.0, %v1840
        %v1843 = vmul.f32 %v1775, %v1841
        %v1844 = vmul.f32 %v1776, %v1842
        %v1845 = vadd.f32 %v1843, 1.0
        %v1846 = vadd.f32 %v1844, 1.0
        %v1847 = vmul.f32 %v1769, %v1845
        %v1848 = vmul.f32 %v1770, %v1846
        %v1849 = vmul.f32 %v1683, %v1847
        %v1850 = vmul.f32 %v1685, %v1848
        %v1851 = vadd.f32 %v1767, %v1849
        %v1852 = vadd.f32 %v1768, %v1850
        %v1854 = vsel %vm1122, %v1851, 0
        %v1857 = vsel %vm1122, %v1852, 0
        %1859 = vmatpush.msra.mxu0 0.0
        %1860 = vmatpush.msra.mxu0 0.0
        %1861 = vmatpush.msra.mxu0 0.0
        %1862 = vmatpush.msra.mxu0 0.0
        %1863 = vmatpush.msra.mxu0 %v328
        %1864 = vmatpush.msra.mxu0 %v327
        %1865 = vmatpush.msra.mxu0 %v326
        %1866 = vmatpush.msra.mxu0 %v325
        %1867 = vmatpush.msra.mxu0 %v324
        %1868 = vmatpush.msra.mxu0 %v323
        %1869 = vmatpush.msra.mxu0 %v322
        %1870 = vmatpush.msra.mxu0 %v321
        %1871 = vmatpush.msra.mxu0 %v320
        %1872 = vmatpush.msra.mxu0 %v319
        %1873 = vmatpush.msra.mxu0 %v318
        %1874 = vmatpush.msra.mxu0 %v317
        %1875 = vmatmul.f32.gmra.mxu0 %v1854
        %v1876 = vpop.f32.mrf.mxu0
        %v1877 = vadd.f32 0.0, %v1876
        %1878 = vmatmul.f32.gmra.mxu0 %v1857
        %v1879 = vpop.f32.mrf.mxu0
        %v1880 = vadd.f32 0.0, %v1879
        %1881 = vdwg.mxu0
        %v1882 = vadd.f32 %v1155, %v1877
        %v1883 = vadd.f32 %v1156, %v1880
        %v1884 = vperm.slane %v302, 3
        %v1885 = vadd.f32 %v1882, %v1884
        %v1886 = vadd.f32 %v1883, %v1884
        %v1887 = vmul.f32 %v1885, %v340
        %v1888 = vmul.f32 %v1886, %v341
        %v1889 = vsel %vm418, %v1887, 0.0
        %v1890 = vsel %vm418, %v1888, 0.0
        %v1891 = vadd.f32 %v1889, %v1890
        %v1892 = vrot.slane %v1891, 4
        %v1893 = vadd.f32 %v1891, %v1892
        %v1894 = vrot.slane %v1893, 2
        %v1895 = vadd.f32 %v1893, %v1894
        %v1896 = vrot.slane %v1895, 1
        %v1897 = vadd.f32 %v1895, %v1896
        %v1898 = vmul.f32 %v1897, 0.06666667
        %v1900 = vrot.slane %v300, 1
        %v1903 = vsel %vm418, %v1898, 0
        %1905 = vmatpush.msra.mxu0 0.0
        %1906 = vmatpush.msra.mxu0 0.0
        %1907 = vmatpush.msra.mxu0 0.0
        %1908 = vmatpush.msra.mxu0 0.0
        %1909 = vmatpush.msra.mxu0 0.0
        %1910 = vmatpush.msra.mxu0 0.0
        %1911 = vmatpush.msra.mxu0 0.0
        %1912 = vmatpush.msra.mxu0 0.0
        %1913 = vmatpush.msra.mxu0 0.0
        %1914 = vmatpush.msra.mxu0 0.0
        %1915 = vmatpush.msra.mxu0 0.0
        %1916 = vmatpush.msra.mxu0 0.0
        %1917 = vmatpush.msra.mxu0 %v332
        %1918 = vmatpush.msra.mxu0 %v331
        %1919 = vmatpush.msra.mxu0 %v330
        %1920 = vmatpush.msra.mxu0 %v329
        %1921 = vmatmul.f32.gmra.mxu0 %v1903
        %v1922 = vpop.f32.mrf.mxu0
        %v1923 = vadd.f32 %v1900, %v1922
        %1924 = vdwg.mxu0
        %vm1925 = vcmask 32768
        %1926 = vst.msk [vmem:[%s284] sm:$0x1] %vm1925, %v1923
        %s1927 = sand.u32 %s182, 1
        %s1928 = scalar_lea.sflag [#allocation3], %s1927
        %s1929 = sand.u32 %s182, 1
        %s1930 = scalar_lea.vmem [#allocation5], %s1929
        // Predicated region
        $region53: #{tslanet_forward.1} parent=47 // pred_check
          %p1931 = pneg %p192
        $region54: #{tslanet_forward.1} parent=47 // pred_check_branch
          %1933 = sbr.rel (%p1931) target = $region56
        $region55: #{tslanet_forward.1} parent=47 // pred_region
          %1935 = vsyncadd %s1928, 0
          %s1936 = scalar_lea.hbm %s7, %s22
          %s1938 = sshll.u32 %s1930, 4
          %s1939 = int_to_ptr.vmem [resolvable:$true] %s1938
          %s1940 = sshll.u32 %s1936, 4
          %s1941 = int_to_ptr.hbm [resolvable:$true] %s1940
          %1943 = dma.vmem_to_hbm [thread:$0]  %s1939, 16, %s1941, %s1928
        $region56: #{tslanet_forward.1} parent=47 // pred_fallthru
          _
      $region48: #{tslanet_forward.1} parent=5 // pred_fallthru
        _
      %p1944 = scmp.le.s32.totalorder 2, %s17
      // Predicated region
      $region57: #{tslanet_forward.1} parent=5 // pred_check
        %p1945 = pneg %p1944
      $region58: #{tslanet_forward.1} parent=5 // pred_check_branch
        %1947 = sbr.rel (%p1945) target = $region60
      $region59: #{tslanet_forward.1} parent=5 // pred_region
        %s1948 = ssub.s32 %s17, 2
        // Predicated region
        $region61: #{tslanet_forward.1} parent=59 // pred_check
          %p1949 = pneg %p198
        $region62: #{tslanet_forward.1} parent=59 // pred_check_branch
          %1951 = sbr.rel (%p1949) target = $region64
        $region63: #{tslanet_forward.1} parent=59 // pred_region
          %s1952 = sand.u32 %s183, 1
          %s1953 = scalar_lea.sflag [#allocation3], %s1952
          %s1954 = sand.u32 %s183, 1
          %s1955 = scalar_lea.vmem [#allocation5], %s1954
          %1957 = dma.done %s1953, 16
        $region64: #{tslanet_forward.1} parent=59 // pred_fallthru
          _
      $region60: #{tslanet_forward.1} parent=5 // pred_fallthru
        _
    $region6: #{tslanet_forward.1} parent=1 // loop_footer
      %s21 = sadd.s32 1, %s17
    $region7: #{tslanet_forward.1} parent=1 // loop_footer_branch
      %16 = sbr.rel target = $region3
    $region8: #{tslanet_forward.1} parent=1 // loop_exit
      _
    %1958 = vsyncpa [#allocation3], 1
    %s1959 = scalar_lea.sflag [#allocation3], 1
    %1960 = vsyncpa %s1959, 1
    %1961 = vsyncpa [#allocation4], 1
    %s1962 = scalar_lea.sflag [#allocation4], 1
    %1963 = vsyncpa %s1962, 1

</llo_original>
